<compile_context>
chip_gen: v6e
topology: v6e:2x2x1
jax: 0.10.0
libtpu: 0.0.40
codegen_flags: <defaults>
</compile_context>

<pallas_src>
import functools

import jax
import jax.numpy as jnp
from jax.experimental import pallas as pl
from jax.experimental.pallas import tpu as pltpu

# ---- Module hyper-parameters (defaults of the PyTorch MLP) ----
INPUT_DIM = 2
TIME_DIM = 1
COND_DIM = 1
HIDDEN_DIM = 256
VOCAB_SIZE = 4
CONTEXT_LEN = 1
DEPTH = 3

IN_FEATURES = INPUT_DIM + TIME_DIM + COND_DIM * CONTEXT_LEN  # 4
IN_PAD = 16                                 # pad the first matmul's K to a bf16-native sublane tile
D_OUT = CONTEXT_LEN * VOCAB_SIZE            # 4
OUT_W = 8                                   # packed output: v (2) | d (4) | zero pad (2)
N_MAIN = DEPTH - 1                          # 2
N_HEAD_MID = 2                              # hidden->hidden layers per head after the fused entry layer
TILE_M_MAX = 1024                           # rows per grid step (multiple of 128; fits v5e/v6e/v7x VMEM)

# PyTorch layer order, weights stored (in, out):
#   0: input_layer; 1..2: main; 3..6: v_out; 7..10: d_out
LAYER_DIMS = (
    [(IN_FEATURES, HIDDEN_DIM)]
    + [(HIDDEN_DIM, HIDDEN_DIM)] * N_MAIN
    + [(HIDDEN_DIM, HIDDEN_DIM)] * 3 + [(HIDDEN_DIM, INPUT_DIM)]
    + [(HIDDEN_DIM, HIDDEN_DIM)] * 3 + [(HIDDEN_DIM, D_OUT)]
)
NUM_LAYERS = len(LAYER_DIMS)  # 11


def _use_bf16_elementwise() -> bool:
    """bf16 VPU/EUP exists on v6e/v7x; keep elementwise math in f32 on v2..v5."""
    try:
        kind = jax.devices()[0].device_kind.lower()
    except Exception:  # pragma: no cover - backend query failed; bf16 is the common case
        return True
    return not any(tag in kind for tag in ("v2", "v3", "v4", "v5"))


USE_BF16_ELEMENTWISE = _use_bf16_elementwise()


def _swish_f32(z):
    """f32 reference swish (used by the pure-JAX reference)."""
    return jax.nn.sigmoid(z) * z


def _round_up(n, m):
    return pl.cdiv(n, m) * m


def _choose_tiling(rows):
    """Pick (tile_m, rows_padded). Guarantees >=2 grid steps and bounded row padding."""
    rows8 = _round_up(rows, 8)
    if rows8 <= TILE_M_MAX:
        # split into 2 tiles so both v7x TensorCores get work (parallel grid axis)
        tile_m = max(8, _round_up(pl.cdiv(rows8, 2), 8))
        return tile_m, 2 * tile_m
    # large batches: biggest tile in {1024,512,256,128} with <=10% row padding
    for t in (TILE_M_MAX, 512, 256, 128):
        rows_p = _round_up(rows8, t)
        if rows_p - rows8 <= rows_p // 10:
            return t, rows_p
    return 128, _round_up(rows8, 128)


def mlp_kernel(h_ref, w_in_ref, b_in_ref, w_main_ref, b_main_ref,
               w_h1_ref, b_h1_ref, w_vmid_ref, b_vmid_ref,
               w_dmid_ref, b_dmid_ref, w_vout_ref, w_dout_ref, b_out_ref,
               out_ref, *, bf16_elementwise):
    """One row-tile of the fused MLP (trunk + both heads). Weights are VMEM-resident."""
    bf16 = jnp.bfloat16
    f32 = jnp.float32

    def lin(a, w, b):
        # bf16 MXU operands, f32 accumulation, f32 bias add.
        return jnp.dot(a.astype(bf16), w, preferred_element_type=f32) + b

    def swish(z_f32):
        if bf16_elementwise:
            # v6e/v7x: bf16 VPU/EUP -> 2x packing, half the vreg pressure.
            z = z_f32.astype(bf16)
            return jax.nn.sigmoid(z) * z
        # v5e and older: f32 path; exp + approx reciprocal both live in the EUP slot.
        return z_f32 * pl.reciprocal(1.0 + jnp.exp(-z_f32), approx=True)

    # input_layer (K padded to 16; pad rows of w_in are zero); h_ref arrives in bf16.
    h = lin(h_ref[...], w_in_ref[...], b_in_ref[...])            # (tile_m, H) f32
    # main: (Swish, Linear) x (DEPTH-1)
    for i in range(N_MAIN):
        h = lin(swish(h), w_main_ref[i], b_main_ref[i])

    # fused first layer of both heads: shared LHS = swish(trunk), W = [W_v1 | W_d1]
    trunk_s = swish(h)
    hd = lin(trunk_s, w_h1_ref[...], b_h1_ref[...])              # (tile_m, 2H)
    v = hd[:, :HIDDEN_DIM]
    d = hd[:, HIDDEN_DIM:]

    # middle hidden->hidden layers of each head
    for i in range(N_HEAD_MID):
        v = lin(swish(v), w_vmid_ref[i], b_vmid_ref[i])
        d = lin(swish(d), w_dmid_ref[i], b_dmid_ref[i])

    # tiny output heads: two zero-padded (H, OUT_W) matmuls summed (no concat of LHS).
    #   out[:, :2] = swish(v) @ W_v4 + b_v4 ; out[:, 2:6] = swish(d) @ W_d4 + b_d4
    out = (jnp.dot(swish(v).astype(bf16), w_vout_ref[...], preferred_element_type=f32)
           + jnp.dot(swish(d).astype(bf16), w_dout_ref[...], preferred_element_type=f32)
           + b_out_ref[...])
    out_ref[...] = out.astype(out_ref.dtype)


def init_params(key):
    """Deterministic init mimicking nn.Linear's U(-1/sqrt(fan_in), 1/sqrt(fan_in))."""
    ws, bs = [], []
    for (din, dout) in LAYER_DIMS:
        key, kw, kb = jax.random.split(key, 3)
        bound = 1.0 / (din ** 0.5)
        ws.append(jax.random.uniform(kw, (din, dout), jnp.float32, -bound, bound))
        bs.append(jax.random.uniform(kb, (1, dout), jnp.float32, -bound, bound))
    return ws, bs


def pack_params(ws, bs):
    """Pack the 11 Linear layers into a few bf16 VMEM-resident slabs (done once)."""
    bf = jnp.bfloat16
    f32 = jnp.float32
    # input layer, K padded 4 -> 16 with zero rows (bf16-native sublane tile)
    w_in = jnp.zeros((IN_PAD, HIDDEN_DIM), f32).at[:IN_FEATURES].set(ws[0]).astype(bf)
    b_in = bs[0].astype(f32)                                        # (1, H)
    # trunk hidden layers, stacked
    w_main = jnp.stack([ws[1], ws[2]]).astype(bf)                   # (2, H, H)
    b_main = jnp.stack([bs[1], bs[2]]).astype(f32)                  # (2, 1, H)
    # fused first layer of both heads (shared LHS)
    w_h1 = jnp.concatenate([ws[3], ws[7]], axis=1).astype(bf)       # (H, 2H)
    b_h1 = jnp.concatenate([bs[3], bs[7]], axis=1).astype(f32)      # (1, 2H)
    # per-head middle layers, stacked
    w_vmid = jnp.stack([ws[4], ws[5]]).astype(bf)                   # (2, H, H)
    b_vmid = jnp.stack([bs[4], bs[5]]).astype(f32)                  # (2, 1, H)
    w_dmid = jnp.stack([ws[8], ws[9]]).astype(bf)                   # (2, H, H)
    b_dmid = jnp.stack([bs[8], bs[9]]).astype(f32)                  # (2, 1, H)
    # tiny output heads, each zero-padded to OUT_W columns (summed in-kernel; no concat)
    w_vout = jnp.zeros((HIDDEN_DIM, OUT_W), f32).at[:, :INPUT_DIM].set(ws[6]).astype(bf)
    w_dout = jnp.zeros((HIDDEN_DIM, OUT_W), f32) \
        .at[:, INPUT_DIM:INPUT_DIM + D_OUT].set(ws[10]).astype(bf)
    b_out = jnp.zeros((1, OUT_W), f32)
    b_out = b_out.at[:, :INPUT_DIM].set(bs[6])
    b_out = b_out.at[:, INPUT_DIM:INPUT_DIM + D_OUT].set(bs[10])
    return (w_in, b_in, w_main, b_main, w_h1, b_h1,
            w_vmid, b_vmid, w_dmid, b_dmid, w_vout, w_dout, b_out)


def _resident_spec(arr):
    nd = arr.ndim
    return pl.BlockSpec(arr.shape, lambda i, _nd=nd: (0,) * _nd)


@jax.jit
def mlp_forward(x, t, y, s, packed):
    """Matches MLP.forward(x, t, y, s) -> (v_out, d_out). `s` is unused (as in PyTorch)."""
    del s
    B, N = y.shape
    sz = x.shape
    x2 = x.reshape(-1, INPUT_DIM).astype(jnp.float32)
    rows = x2.shape[0]
    t2 = jnp.broadcast_to(t.reshape(-1, 1).astype(jnp.float32), (rows, 1))
    y2 = y.reshape(-1, 1).astype(jnp.float32)
    h = jnp.concatenate([x2, t2, y2], axis=1)               # (rows, IN_FEATURES)

    # adaptive row tiling (static at trace time): >=2 grid steps, bounded padding
    tile_m, rows_p = _choose_tiling(rows)
    h = jnp.pad(h, ((0, rows_p - rows), (0, IN_PAD - IN_FEATURES)))  # zero-pad rows + K
    h = h.astype(jnp.bfloat16)                               # bf16 activation tile (half the DMA)

    grid = (rows_p // tile_m,)
    row_in_spec = pl.BlockSpec((tile_m, IN_PAD), lambda i: (i, 0))
    row_out_spec = pl.BlockSpec((tile_m, OUT_W), lambda i: (i, 0))
    in_specs = [row_in_spec] + [_resident_spec(p) for p in packed]

    # advisory cost estimate
    flops_per_row = 2 * (IN_PAD * HIDDEN_DIM
                         + N_MAIN * HIDDEN_DIM * HIDDEN_DIM
                         + HIDDEN_DIM * 2 * HIDDEN_DIM
                         + 2 * N_HEAD_MID * HIDDEN_DIM * HIDDEN_DIM
                         + 2 * HIDDEN_DIM * OUT_W)
    transc_per_row = 9 * HIDDEN_DIM
    param_bytes = sum(int(p.size) * p.dtype.itemsize for p in packed)
    cost = pl.CostEstimate(
        flops=int(flops_per_row * rows_p),
        transcendentals=int(transc_per_row * rows_p),
        bytes_accessed=int(param_bytes + rows_p * (IN_PAD * 2 + OUT_W * 4)),
    )

    kernel = functools.partial(mlp_kernel, bf16_elementwise=USE_BF16_ELEMENTWISE)
    out = pl.pallas_call(
        kernel,
        out_shape=jax.ShapeDtypeStruct((rows_p, OUT_W), jnp.float32),
        grid=grid,
        in_specs=in_specs,
        out_specs=row_out_spec,
        compiler_params=pltpu.CompilerParams(
            dimension_semantics=("parallel",),      # megacore sharding of the rows axis
            vmem_limit_bytes=32 * 1024 * 1024,      # safe for tile_m<=1024 on v5e/v6e/v7x (64 MiB/TC)
        ),
        cost_estimate=cost,
    )(h, *packed)

    v_flat = out[:rows, :INPUT_DIM]
    d_flat = out[:rows, INPUT_DIM:INPUT_DIM + D_OUT]
    return v_flat.reshape(sz), d_flat.reshape(B, N, VOCAB_SIZE)


def mlp_reference(x, t, y, s, ws, bs):
    """Pure-JAX f32 reference (mirrors the PyTorch forward exactly)."""
    del s
    B, N = y.shape
    sz = x.shape
    x2 = x.reshape(-1, INPUT_DIM).astype(jnp.float32)
    rows = x2.shape[0]
    t2 = jnp.broadcast_to(t.reshape(-1, 1).astype(jnp.float32), (rows, 1))
    h = jnp.concatenate([x2, t2, y.reshape(-1, 1).astype(jnp.float32)], axis=1)

    def lin(v, i):
        return v @ ws[i] + bs[i]

    h = lin(h, 0)
    for i in range(N_MAIN):
        h = lin(_swish_f32(h), 1 + i)
    trunk = h
    v = trunk
    for i in range(4):
        v = lin(_swish_f32(v), 3 + i)
    d = trunk
    for i in range(4):
        d = lin(_swish_f32(d), 7 + i)
    return v.reshape(sz), d.reshape(B, N, VOCAB_SIZE)


def _run_case(key, B, ws, bs, packed):
    kx, kt, ky, ks = jax.random.split(key, 4)
    N = CONTEXT_LEN  # 1
    x = jax.random.normal(kx, (B, INPUT_DIM), jnp.float32)          # continuous input
    t = jax.random.uniform(kt, (B,), jnp.float32)                   # time
    y = jax.random.randint(ky, (B, N), 0, VOCAB_SIZE, jnp.int32)    # discrete condition
    s = jax.random.normal(ks, (B, 1), jnp.float32)                  # unused in forward

    v_out, d_out = mlp_forward(x, t, y, s, packed)
    jax.block_until_ready((v_out, d_out))

    v_ref, d_ref = mlp_reference(x, t, y, s, ws, bs)
    assert v_out.shape == (B, INPUT_DIM) and d_out.shape == (B, N, VOCAB_SIZE)
    # bf16 MXU operands (+ bf16 elementwise on v6e/v7x) vs pure-f32 reference -> relaxed tolerance.
    assert jnp.allclose(v_out, v_ref, atol=3e-2, rtol=3e-2)
    assert jnp.allclose(d_out, d_ref, atol=3e-2, rtol=3e-2)


if __name__ == "__main__":
    key = jax.random.PRNGKey(0)
    kp, k1, k2 = jax.random.split(key, 3)
    ws, bs = init_params(kp)
    packed = pack_params(ws, bs)

    _run_case(k1, 8, ws, bs, packed)      # tiny batch -> 2-step grid (both v7x cores busy)
    _run_case(k2, 1100, ws, bs, packed)   # larger batch -> adaptive tile with bounded padding
    print("KERNEL_OK")
</pallas_src>

<mosaic_0001>
module attributes {stable_mosaic.version = 11 : i64} {
  func.func @mlp_kernel(%arg0: i32, %arg1: memref<8x16xbf16, #tpu.memory_space<vmem>>, %arg2: memref<16x256xbf16, #tpu.memory_space<vmem>>, %arg3: memref<1x256xf32, #tpu.memory_space<vmem>>, %arg4: memref<2x256x256xbf16, #tpu.memory_space<vmem>>, %arg5: memref<2x1x256xf32, #tpu.memory_space<vmem>>, %arg6: memref<256x512xbf16, #tpu.memory_space<vmem>>, %arg7: memref<1x512xf32, #tpu.memory_space<vmem>>, %arg8: memref<2x256x256xbf16, #tpu.memory_space<vmem>>, %arg9: memref<2x1x256xf32, #tpu.memory_space<vmem>>, %arg10: memref<2x256x256xbf16, #tpu.memory_space<vmem>>, %arg11: memref<2x1x256xf32, #tpu.memory_space<vmem>>, %arg12: memref<256x8xbf16, #tpu.memory_space<vmem>>, %arg13: memref<256x8xbf16, #tpu.memory_space<vmem>>, %arg14: memref<1x8xf32, #tpu.memory_space<vmem>>, %arg15: memref<8x8xf32, #tpu.memory_space<vmem>>) attributes {dimension_semantics = [#tpu.dimension_semantics<parallel>], iteration_bounds = array<i64: 2>, scalar_prefetch = 0 : i64, scratch_operands = 0 : i64, tpu.core_type = #tpu.core_type<tc>, window_params = [{transform_indices = @transform_0, window_bounds = array<i64: 8, 16>}, {pipeline_mode = #tpu.pipeline_mode<synchronous>, transform_indices = @transform_1, window_bounds = array<i64: 16, 256>}, {pipeline_mode = #tpu.pipeline_mode<synchronous>, transform_indices = @transform_2, window_bounds = array<i64: 1, 256>}, {pipeline_mode = #tpu.pipeline_mode<synchronous>, transform_indices = @transform_3, window_bounds = array<i64: 2, 256, 256>}, {pipeline_mode = #tpu.pipeline_mode<synchronous>, transform_indices = @transform_4, window_bounds = array<i64: 2, 1, 256>}, {pipeline_mode = #tpu.pipeline_mode<synchronous>, transform_indices = @transform_5, window_bounds = array<i64: 256, 512>}, {pipeline_mode = #tpu.pipeline_mode<synchronous>, transform_indices = @transform_6, window_bounds = array<i64: 1, 512>}, {pipeline_mode = #tpu.pipeline_mode<synchronous>, transform_indices = @transform_7, window_bounds = array<i64: 2, 256, 256>}, {pipeline_mode = #tpu.pipeline_mode<synchronous>, transform_indices = @transform_8, window_bounds = array<i64: 2, 1, 256>}, {pipeline_mode = #tpu.pipeline_mode<synchronous>, transform_indices = @transform_9, window_bounds = array<i64: 2, 256, 256>}, {pipeline_mode = #tpu.pipeline_mode<synchronous>, transform_indices = @transform_10, window_bounds = array<i64: 2, 1, 256>}, {pipeline_mode = #tpu.pipeline_mode<synchronous>, transform_indices = @transform_11, window_bounds = array<i64: 256, 8>}, {pipeline_mode = #tpu.pipeline_mode<synchronous>, transform_indices = @transform_12, window_bounds = array<i64: 256, 8>}, {pipeline_mode = #tpu.pipeline_mode<synchronous>, transform_indices = @transform_13, window_bounds = array<i64: 1, 8>}, {transform_indices = @transform_14, window_bounds = array<i64: 8, 8>}]} {
    %c0 = arith.constant 0 : index
    %c0_0 = arith.constant 0 : index
    %0 = vector.load %arg1[%c0, %c0_0] : memref<8x16xbf16, #tpu.memory_space<vmem>>, vector<8x16xbf16>
    %c0_1 = arith.constant 0 : index
    %c0_2 = arith.constant 0 : index
    %1 = vector.load %arg2[%c0_1, %c0_2] : memref<16x256xbf16, #tpu.memory_space<vmem>>, vector<16x256xbf16>
    %c0_3 = arith.constant 0 : index
    %c0_4 = arith.constant 0 : index
    %2 = vector.load %arg3[%c0_3, %c0_4] : memref<1x256xf32, #tpu.memory_space<vmem>>, vector<1x256xf32>
    %cst = arith.constant dense<0.000000e+00> : vector<8x256xf32>
    %3 = tpu.matmul %0, %1, %cst {dimension_numbers = #tpu.dot_dimension_numbers<[1], [0], [0], [1], [0, 0, 1, 1], [], []>} : vector<8x16xbf16>, vector<16x256xbf16>, vector<8x256xf32> -> vector<8x256xf32>
    %4 = vector.broadcast %2 : vector<1x256xf32> to vector<8x256xf32>
    %5 = arith.addf %3, %4 : vector<8x256xf32>
    %6 = arith.truncf %5 : vector<8x256xf32> to vector<8x256xbf16>
    %7 = arith.negf %6 : vector<8x256xbf16>
    %8 = math.exp %7 : vector<8x256xbf16>
    %cst_5 = arith.constant 1.000000e+00 : bf16
    %9 = vector.broadcast %cst_5 : bf16 to vector<8x256xbf16>
    %10 = arith.addf %9, %8 : vector<8x256xbf16>
    %11 = arith.divf %9, %10 : vector<8x256xbf16>
    %12 = arith.mulf %11, %6 : vector<8x256xbf16>
    %c0_6 = arith.constant 0 : index
    %c0_7 = arith.constant 0 : index
    %c0_8 = arith.constant 0 : index
    %13 = vector.load %arg4[%c0_6, %c0_7, %c0_8] : memref<2x256x256xbf16, #tpu.memory_space<vmem>>, vector<1x256x256xbf16>
    %14 = vector.shape_cast %13 : vector<1x256x256xbf16> to vector<256x256xbf16>
    %c0_9 = arith.constant 0 : index
    %c0_10 = arith.constant 0 : index
    %c0_11 = arith.constant 0 : index
    %15 = vector.load %arg5[%c0_9, %c0_10, %c0_11] : memref<2x1x256xf32, #tpu.memory_space<vmem>>, vector<1x1x256xf32>
    %16 = vector.shape_cast %15 : vector<1x1x256xf32> to vector<1x256xf32>
    %cst_12 = arith.constant dense<0.000000e+00> : vector<8x256xf32>
    %17 = tpu.matmul %12, %14, %cst_12 {dimension_numbers = #tpu.dot_dimension_numbers<[1], [0], [0], [1], [0, 0, 1, 1], [], []>} : vector<8x256xbf16>, vector<256x256xbf16>, vector<8x256xf32> -> vector<8x256xf32>
    %18 = vector.broadcast %16 : vector<1x256xf32> to vector<8x256xf32>
    %19 = arith.addf %17, %18 : vector<8x256xf32>
    %20 = arith.truncf %19 : vector<8x256xf32> to vector<8x256xbf16>
    %21 = arith.negf %20 : vector<8x256xbf16>
    %22 = math.exp %21 : vector<8x256xbf16>
    %cst_13 = arith.constant 1.000000e+00 : bf16
    %23 = vector.broadcast %cst_13 : bf16 to vector<8x256xbf16>
    %24 = arith.addf %23, %22 : vector<8x256xbf16>
    %25 = arith.divf %23, %24 : vector<8x256xbf16>
    %26 = arith.mulf %25, %20 : vector<8x256xbf16>
    %c1 = arith.constant 1 : index
    %c0_14 = arith.constant 0 : index
    %c0_15 = arith.constant 0 : index
    %27 = vector.load %arg4[%c1, %c0_14, %c0_15] : memref<2x256x256xbf16, #tpu.memory_space<vmem>>, vector<1x256x256xbf16>
    %28 = vector.shape_cast %27 : vector<1x256x256xbf16> to vector<256x256xbf16>
    %c1_16 = arith.constant 1 : index
    %c0_17 = arith.constant 0 : index
    %c0_18 = arith.constant 0 : index
    %29 = vector.load %arg5[%c1_16, %c0_17, %c0_18] : memref<2x1x256xf32, #tpu.memory_space<vmem>>, vector<1x1x256xf32>
    %30 = vector.shape_cast %29 : vector<1x1x256xf32> to vector<1x256xf32>
    %cst_19 = arith.constant dense<0.000000e+00> : vector<8x256xf32>
    %31 = tpu.matmul %26, %28, %cst_19 {dimension_numbers = #tpu.dot_dimension_numbers<[1], [0], [0], [1], [0, 0, 1, 1], [], []>} : vector<8x256xbf16>, vector<256x256xbf16>, vector<8x256xf32> -> vector<8x256xf32>
    %32 = vector.broadcast %30 : vector<1x256xf32> to vector<8x256xf32>
    %33 = arith.addf %31, %32 : vector<8x256xf32>
    %34 = arith.truncf %33 : vector<8x256xf32> to vector<8x256xbf16>
    %35 = arith.negf %34 : vector<8x256xbf16>
    %36 = math.exp %35 : vector<8x256xbf16>
    %cst_20 = arith.constant 1.000000e+00 : bf16
    %37 = vector.broadcast %cst_20 : bf16 to vector<8x256xbf16>
    %38 = arith.addf %37, %36 : vector<8x256xbf16>
    %39 = arith.divf %37, %38 : vector<8x256xbf16>
    %40 = arith.mulf %39, %34 : vector<8x256xbf16>
    %c0_21 = arith.constant 0 : index
    %c0_22 = arith.constant 0 : index
    %41 = vector.load %arg6[%c0_21, %c0_22] : memref<256x512xbf16, #tpu.memory_space<vmem>>, vector<256x512xbf16>
    %c0_23 = arith.constant 0 : index
    %c0_24 = arith.constant 0 : index
    %42 = vector.load %arg7[%c0_23, %c0_24] : memref<1x512xf32, #tpu.memory_space<vmem>>, vector<1x512xf32>
    %cst_25 = arith.constant dense<0.000000e+00> : vector<8x512xf32>
    %43 = tpu.matmul %40, %41, %cst_25 {dimension_numbers = #tpu.dot_dimension_numbers<[1], [0], [0], [1], [0, 0, 1, 1], [], []>} : vector<8x256xbf16>, vector<256x512xbf16>, vector<8x512xf32> -> vector<8x512xf32>
    %44 = vector.broadcast %42 : vector<1x512xf32> to vector<8x512xf32>
    %45 = arith.addf %43, %44 : vector<8x512xf32>
    %46 = vector.extract_strided_slice %45 {offsets = [0, 0], sizes = [8, 256], strides = [1, 1]} : vector<8x512xf32> to vector<8x256xf32>
    %47 = vector.extract_strided_slice %45 {offsets = [0, 256], sizes = [8, 256], strides = [1, 1]} : vector<8x512xf32> to vector<8x256xf32>
    %48 = arith.truncf %46 : vector<8x256xf32> to vector<8x256xbf16>
    %49 = arith.negf %48 : vector<8x256xbf16>
    %50 = math.exp %49 : vector<8x256xbf16>
    %cst_26 = arith.constant 1.000000e+00 : bf16
    %51 = vector.broadcast %cst_26 : bf16 to vector<8x256xbf16>
    %52 = arith.addf %51, %50 : vector<8x256xbf16>
    %53 = arith.divf %51, %52 : vector<8x256xbf16>
    %54 = arith.mulf %53, %48 : vector<8x256xbf16>
    %c0_27 = arith.constant 0 : index
    %c0_28 = arith.constant 0 : index
    %c0_29 = arith.constant 0 : index
    %55 = vector.load %arg8[%c0_27, %c0_28, %c0_29] : memref<2x256x256xbf16, #tpu.memory_space<vmem>>, vector<1x256x256xbf16>
    %56 = vector.shape_cast %55 : vector<1x256x256xbf16> to vector<256x256xbf16>
    %c0_30 = arith.constant 0 : index
    %c0_31 = arith.constant 0 : index
    %c0_32 = arith.constant 0 : index
    %57 = vector.load %arg9[%c0_30, %c0_31, %c0_32] : memref<2x1x256xf32, #tpu.memory_space<vmem>>, vector<1x1x256xf32>
    %58 = vector.shape_cast %57 : vector<1x1x256xf32> to vector<1x256xf32>
    %cst_33 = arith.constant dense<0.000000e+00> : vector<8x256xf32>
    %59 = tpu.matmul %54, %56, %cst_33 {dimension_numbers = #tpu.dot_dimension_numbers<[1], [0], [0], [1], [0, 0, 1, 1], [], []>} : vector<8x256xbf16>, vector<256x256xbf16>, vector<8x256xf32> -> vector<8x256xf32>
    %60 = vector.broadcast %58 : vector<1x256xf32> to vector<8x256xf32>
    %61 = arith.addf %59, %60 : vector<8x256xf32>
    %62 = arith.truncf %47 : vector<8x256xf32> to vector<8x256xbf16>
    %63 = arith.negf %62 : vector<8x256xbf16>
    %64 = math.exp %63 : vector<8x256xbf16>
    %cst_34 = arith.constant 1.000000e+00 : bf16
    %65 = vector.broadcast %cst_34 : bf16 to vector<8x256xbf16>
    %66 = arith.addf %65, %64 : vector<8x256xbf16>
    %67 = arith.divf %65, %66 : vector<8x256xbf16>
    %68 = arith.mulf %67, %62 : vector<8x256xbf16>
    %c0_35 = arith.constant 0 : index
    %c0_36 = arith.constant 0 : index
    %c0_37 = arith.constant 0 : index
    %69 = vector.load %arg10[%c0_35, %c0_36, %c0_37] : memref<2x256x256xbf16, #tpu.memory_space<vmem>>, vector<1x256x256xbf16>
    %70 = vector.shape_cast %69 : vector<1x256x256xbf16> to vector<256x256xbf16>
    %c0_38 = arith.constant 0 : index
    %c0_39 = arith.constant 0 : index
    %c0_40 = arith.constant 0 : index
    %71 = vector.load %arg11[%c0_38, %c0_39, %c0_40] : memref<2x1x256xf32, #tpu.memory_space<vmem>>, vector<1x1x256xf32>
    %72 = vector.shape_cast %71 : vector<1x1x256xf32> to vector<1x256xf32>
    %cst_41 = arith.constant dense<0.000000e+00> : vector<8x256xf32>
    %73 = tpu.matmul %68, %70, %cst_41 {dimension_numbers = #tpu.dot_dimension_numbers<[1], [0], [0], [1], [0, 0, 1, 1], [], []>} : vector<8x256xbf16>, vector<256x256xbf16>, vector<8x256xf32> -> vector<8x256xf32>
    %74 = vector.broadcast %72 : vector<1x256xf32> to vector<8x256xf32>
    %75 = arith.addf %73, %74 : vector<8x256xf32>
    %76 = arith.truncf %61 : vector<8x256xf32> to vector<8x256xbf16>
    %77 = arith.negf %76 : vector<8x256xbf16>
    %78 = math.exp %77 : vector<8x256xbf16>
    %cst_42 = arith.constant 1.000000e+00 : bf16
    %79 = vector.broadcast %cst_42 : bf16 to vector<8x256xbf16>
    %80 = arith.addf %79, %78 : vector<8x256xbf16>
    %81 = arith.divf %79, %80 : vector<8x256xbf16>
    %82 = arith.mulf %81, %76 : vector<8x256xbf16>
    %c1_43 = arith.constant 1 : index
    %c0_44 = arith.constant 0 : index
    %c0_45 = arith.constant 0 : index
    %83 = vector.load %arg8[%c1_43, %c0_44, %c0_45] : memref<2x256x256xbf16, #tpu.memory_space<vmem>>, vector<1x256x256xbf16>
    %84 = vector.shape_cast %83 : vector<1x256x256xbf16> to vector<256x256xbf16>
    %c1_46 = arith.constant 1 : index
    %c0_47 = arith.constant 0 : index
    %c0_48 = arith.constant 0 : index
    %85 = vector.load %arg9[%c1_46, %c0_47, %c0_48] : memref<2x1x256xf32, #tpu.memory_space<vmem>>, vector<1x1x256xf32>
    %86 = vector.shape_cast %85 : vector<1x1x256xf32> to vector<1x256xf32>
    %cst_49 = arith.constant dense<0.000000e+00> : vector<8x256xf32>
    %87 = tpu.matmul %82, %84, %cst_49 {dimension_numbers = #tpu.dot_dimension_numbers<[1], [0], [0], [1], [0, 0, 1, 1], [], []>} : vector<8x256xbf16>, vector<256x256xbf16>, vector<8x256xf32> -> vector<8x256xf32>
    %88 = vector.broadcast %86 : vector<1x256xf32> to vector<8x256xf32>
    %89 = arith.addf %87, %88 : vector<8x256xf32>
    %90 = arith.truncf %75 : vector<8x256xf32> to vector<8x256xbf16>
    %91 = arith.negf %90 : vector<8x256xbf16>
    %92 = math.exp %91 : vector<8x256xbf16>
    %cst_50 = arith.constant 1.000000e+00 : bf16
    %93 = vector.broadcast %cst_50 : bf16 to vector<8x256xbf16>
    %94 = arith.addf %93, %92 : vector<8x256xbf16>
    %95 = arith.divf %93, %94 : vector<8x256xbf16>
    %96 = arith.mulf %95, %90 : vector<8x256xbf16>
    %c1_51 = arith.constant 1 : index
    %c0_52 = arith.constant 0 : index
    %c0_53 = arith.constant 0 : index
    %97 = vector.load %arg10[%c1_51, %c0_52, %c0_53] : memref<2x256x256xbf16, #tpu.memory_space<vmem>>, vector<1x256x256xbf16>
    %98 = vector.shape_cast %97 : vector<1x256x256xbf16> to vector<256x256xbf16>
    %c1_54 = arith.constant 1 : index
    %c0_55 = arith.constant 0 : index
    %c0_56 = arith.constant 0 : index
    %99 = vector.load %arg11[%c1_54, %c0_55, %c0_56] : memref<2x1x256xf32, #tpu.memory_space<vmem>>, vector<1x1x256xf32>
    %100 = vector.shape_cast %99 : vector<1x1x256xf32> to vector<1x256xf32>
    %cst_57 = arith.constant dense<0.000000e+00> : vector<8x256xf32>
    %101 = tpu.matmul %96, %98, %cst_57 {dimension_numbers = #tpu.dot_dimension_numbers<[1], [0], [0], [1], [0, 0, 1, 1], [], []>} : vector<8x256xbf16>, vector<256x256xbf16>, vector<8x256xf32> -> vector<8x256xf32>
    %102 = vector.broadcast %100 : vector<1x256xf32> to vector<8x256xf32>
    %103 = arith.addf %101, %102 : vector<8x256xf32>
    %104 = arith.truncf %89 : vector<8x256xf32> to vector<8x256xbf16>
    %105 = arith.negf %104 : vector<8x256xbf16>
    %106 = math.exp %105 : vector<8x256xbf16>
    %cst_58 = arith.constant 1.000000e+00 : bf16
    %107 = vector.broadcast %cst_58 : bf16 to vector<8x256xbf16>
    %108 = arith.addf %107, %106 : vector<8x256xbf16>
    %109 = arith.divf %107, %108 : vector<8x256xbf16>
    %110 = arith.mulf %109, %104 : vector<8x256xbf16>
    %c0_59 = arith.constant 0 : index
    %c0_60 = arith.constant 0 : index
    %111 = vector.load %arg12[%c0_59, %c0_60] : memref<256x8xbf16, #tpu.memory_space<vmem>>, vector<256x8xbf16>
    %cst_61 = arith.constant dense<0.000000e+00> : vector<8x8xf32>
    %112 = tpu.matmul %110, %111, %cst_61 {dimension_numbers = #tpu.dot_dimension_numbers<[1], [0], [0], [1], [0, 0, 1, 1], [], []>} : vector<8x256xbf16>, vector<256x8xbf16>, vector<8x8xf32> -> vector<8x8xf32>
    %113 = arith.truncf %103 : vector<8x256xf32> to vector<8x256xbf16>
    %114 = arith.negf %113 : vector<8x256xbf16>
    %115 = math.exp %114 : vector<8x256xbf16>
    %cst_62 = arith.constant 1.000000e+00 : bf16
    %116 = vector.broadcast %cst_62 : bf16 to vector<8x256xbf16>
    %117 = arith.addf %116, %115 : vector<8x256xbf16>
    %118 = arith.divf %116, %117 : vector<8x256xbf16>
    %119 = arith.mulf %118, %113 : vector<8x256xbf16>
    %c0_63 = arith.constant 0 : index
    %c0_64 = arith.constant 0 : index
    %120 = vector.load %arg13[%c0_63, %c0_64] : memref<256x8xbf16, #tpu.memory_space<vmem>>, vector<256x8xbf16>
    %cst_65 = arith.constant dense<0.000000e+00> : vector<8x8xf32>
    %121 = tpu.matmul %119, %120, %cst_65 {dimension_numbers = #tpu.dot_dimension_numbers<[1], [0], [0], [1], [0, 0, 1, 1], [], []>} : vector<8x256xbf16>, vector<256x8xbf16>, vector<8x8xf32> -> vector<8x8xf32>
    %122 = arith.addf %112, %121 : vector<8x8xf32>
    %c0_66 = arith.constant 0 : index
    %c0_67 = arith.constant 0 : index
    %123 = vector.load %arg14[%c0_66, %c0_67] : memref<1x8xf32, #tpu.memory_space<vmem>>, vector<1x8xf32>
    %124 = vector.broadcast %123 : vector<1x8xf32> to vector<8x8xf32>
    %125 = arith.addf %122, %124 : vector<8x8xf32>
    %c0_68 = arith.constant 0 : index
    %c0_69 = arith.constant 0 : index
    %126 = vector.load %arg15[%c0_68, %c0_69] : memref<8x8xf32, #tpu.memory_space<vmem>>, vector<8x8xf32>
    tpu.vector_store %arg15[%c0_68, %c0_69], %125 {strides = array<i32>} : memref<8x8xf32, #tpu.memory_space<vmem>>, vector<8x8xf32>,
    return
  }
  func.func @transform_0(%arg0: i32) -> (i32, i32) {
    %c0_i32 = arith.constant 0 : i32
    %c0_i32_0 = arith.constant 0 : i32
    return %arg0, %c0_i32 : i32, i32
  }
  func.func @transform_1(%arg0: i32) -> (i32, i32) {
    %c0_i32 = arith.constant 0 : i32
    %c0_i32_0 = arith.constant 0 : i32
    %c0_i32_1 = arith.constant 0 : i32
    return %c0_i32, %c0_i32_0 : i32, i32
  }
  func.func @transform_2(%arg0: i32) -> (i32, i32) {
    %c0_i32 = arith.constant 0 : i32
    %c0_i32_0 = arith.constant 0 : i32
    %c0_i32_1 = arith.constant 0 : i32
    return %c0_i32, %c0_i32_0 : i32, i32
  }
  func.func @transform_3(%arg0: i32) -> (i32, i32, i32) {
    %c0_i32 = arith.constant 0 : i32
    %c0_i32_0 = arith.constant 0 : i32
    %c0_i32_1 = arith.constant 0 : i32
    %c0_i32_2 = arith.constant 0 : i32
    return %c0_i32, %c0_i32_0, %c0_i32_1 : i32, i32, i32
  }
  func.func @transform_4(%arg0: i32) -> (i32, i32, i32) {
    %c0_i32 = arith.constant 0 : i32
    %c0_i32_0 = arith.constant 0 : i32
    %c0_i32_1 = arith.constant 0 : i32
    %c0_i32_2 = arith.constant 0 : i32
    return %c0_i32, %c0_i32_0, %c0_i32_1 : i32, i32, i32
  }
  func.func @transform_5(%arg0: i32) -> (i32, i32) {
    %c0_i32 = arith.constant 0 : i32
    %c0_i32_0 = arith.constant 0 : i32
    %c0_i32_1 = arith.constant 0 : i32
    return %c0_i32, %c0_i32_0 : i32, i32
  }
  func.func @transform_6(%arg0: i32) -> (i32, i32) {
    %c0_i32 = arith.constant 0 : i32
    %c0_i32_0 = arith.constant 0 : i32
    %c0_i32_1 = arith.constant 0 : i32
    return %c0_i32, %c0_i32_0 : i32, i32
  }
  func.func @transform_7(%arg0: i32) -> (i32, i32, i32) {
    %c0_i32 = arith.constant 0 : i32
    %c0_i32_0 = arith.constant 0 : i32
    %c0_i32_1 = arith.constant 0 : i32
    %c0_i32_2 = arith.constant 0 : i32
    return %c0_i32, %c0_i32_0, %c0_i32_1 : i32, i32, i32
  }
  func.func @transform_8(%arg0: i32) -> (i32, i32, i32) {
    %c0_i32 = arith.constant 0 : i32
    %c0_i32_0 = arith.constant 0 : i32
    %c0_i32_1 = arith.constant 0 : i32
    %c0_i32_2 = arith.constant 0 : i32
    return %c0_i32, %c0_i32_0, %c0_i32_1 : i32, i32, i32
  }
  func.func @transform_9(%arg0: i32) -> (i32, i32, i32) {
    %c0_i32 = arith.constant 0 : i32
    %c0_i32_0 = arith.constant 0 : i32
    %c0_i32_1 = arith.constant 0 : i32
    %c0_i32_2 = arith.constant 0 : i32
    return %c0_i32, %c0_i32_0, %c0_i32_1 : i32, i32, i32
  }
  func.func @transform_10(%arg0: i32) -> (i32, i32, i32) {
    %c0_i32 = arith.constant 0 : i32
    %c0_i32_0 = arith.constant 0 : i32
    %c0_i32_1 = arith.constant 0 : i32
    %c0_i32_2 = arith.constant 0 : i32
    return %c0_i32, %c0_i32_0, %c0_i32_1 : i32, i32, i32
  }
  func.func @transform_11(%arg0: i32) -> (i32, i32) {
    %c0_i32 = arith.constant 0 : i32
    %c0_i32_0 = arith.constant 0 : i32
    %c0_i32_1 = arith.constant 0 : i32
    return %c0_i32, %c0_i32_0 : i32, i32
  }
  func.func @transform_12(%arg0: i32) -> (i32, i32) {
    %c0_i32 = arith.constant 0 : i32
    %c0_i32_0 = arith.constant 0 : i32
    %c0_i32_1 = arith.constant 0 : i32
    return %c0_i32, %c0_i32_0 : i32, i32
  }
  func.func @transform_13(%arg0: i32) -> (i32, i32) {
    %c0_i32 = arith.constant 0 : i32
    %c0_i32_0 = arith.constant 0 : i32
    %c0_i32_1 = arith.constant 0 : i32
    return %c0_i32, %c0_i32_0 : i32, i32
  }
  func.func @transform_14(%arg0: i32) -> (i32, i32) {
    %c0_i32 = arith.constant 0 : i32
    %c0_i32_0 = arith.constant 0 : i32
    return %arg0, %c0_i32 : i32, i32
  }
}

</mosaic_0001>

<llo_original>
// kernel: mlp_forward.1
$region0: #{mlp_forward.1}
  #allocation0 [shape = 'u32[]', space=smem, size = 0x4, offset = 0x4, fixed_abs, tag = 'smem constant byte address 0x4 - core index']
  #allocation1 [shape = 'u32[144,128]{1,0:T(1,128)}', space=vmem, size = 0x12000, scoped, tag = 'internal scratch']
  %s0 = inlined_call_operand.vmem [shape: bf16[16,16], index: 0, kind: input, shape index: {}]
  %s1 = inlined_call_operand.vmem [shape: bf16[16,256], index: 1, kind: input, shape index: {}]
  %s2 = inlined_call_operand.vmem [shape: f32[1,256], index: 2, kind: input, shape index: {}]
  %s3 = inlined_call_operand.hbm [shape: bf16[2,256,256], index: 3, kind: input, shape index: {}]
  %s4 = inlined_call_operand.vmem [shape: f32[2,1,256], index: 4, kind: input, shape index: {}]
  %s5 = inlined_call_operand.hbm [shape: bf16[256,512], index: 5, kind: input, shape index: {}]
  %s6 = inlined_call_operand.vmem [shape: f32[1,512], index: 6, kind: input, shape index: {}]
  %s7 = inlined_call_operand.hbm [shape: bf16[2,256,256], index: 7, kind: input, shape index: {}]
  %s8 = inlined_call_operand.vmem [shape: f32[2,1,256], index: 8, kind: input, shape index: {}]
  %s9 = inlined_call_operand.hbm [shape: bf16[2,256,256], index: 9, kind: input, shape index: {}]
  %s10 = inlined_call_operand.vmem [shape: f32[2,1,256], index: 10, kind: input, shape index: {}]
  %s11 = inlined_call_operand.vmem [shape: bf16[256,8], index: 11, kind: input, shape index: {}]
  %s12 = inlined_call_operand.vmem [shape: bf16[256,8], index: 12, kind: input, shape index: {}]
  %s13 = inlined_call_operand.vmem [shape: f32[1,8], index: 13, kind: input, shape index: {}]
  %s14 = inlined_call_operand.vmem [shape: f32[16,8], index: 14, kind: output, shape index: {}]
  %s15 = sld [smem:[#allocation0]]
  $region105: #{mlp_forward.1} parent=0
    _
  %s17 = ssub.s32 1, %s15
  %s18 = scalar_select 0, %s17, %s15
  $region1: #{mlp_forward.1} parent=0
    #allocation2 [shape = 'u8[262144]{0}', space=vmem, size = 0x40000, scoped, tag = 'input window, operand 3, single buffered']
    #allocation3 [shape = 's32[2]{0}', space=sflag, size = 0x8, scoped, tag = 'scoped memory for mlp_forward.1']
    #allocation4 [shape = 'u8[262144]{0}', space=vmem, size = 0x40000, scoped, tag = 'input window, operand 5, single buffered']
    #allocation5 [shape = 's32[1]{0}', space=sflag, size = 0x4, scoped, tag = 'scoped memory for mlp_forward.1']
    #allocation6 [shape = 'u8[262144]{0}', space=vmem, size = 0x40000, scoped, tag = 'input window, operand 7, single buffered']
    #allocation7 [shape = 'u8[262144]{0}', space=vmem, size = 0x40000, scoped, tag = 'input window, operand 9, single buffered']
    #allocation8 [shape = 's32[1]{0}', space=sflag, size = 0x4, scoped, tag = 'scoped memory for mlp_forward.1']
    %19 = vsyncpa [#allocation3], 0
    %20 = vsyncpa [#allocation5], 0
    %21 = vsyncpa [#allocation8], 0
    loop: start=0, step=1, limit=4
    $region2: #{mlp_forward.1} parent=1 // loop_pre_header
      _
    $region3: #{mlp_forward.1} parent=1 // loop_header
      %s23 = sphi 0, %s27
      %p24 = scmp.ge.s32.totalorder %s23, 4
      %s33 = sphi 0, %s35
      %s36 = sphi 0, %s33
      %s37 = sphi 0, %s36
      %s53 = sphi 0, %s37
      %s57 = sphi 0, %s57
      %s59 = sphi 0, %s57
      %s60 = sphi 0, %s59
      %s74 = sphi 0, %s60
      %s78 = sphi 0, %s78
      %s80 = sphi 0, %s78
      %s81 = sphi 0, %s80
      %s95 = sphi 0, %s81
      %s99 = sphi 0, %s99
      %s101 = sphi 0, %s99
      %s102 = sphi 0, %s101
      %s116 = sphi 0, %s102
      %s120 = sphi 0, %s120
      %s122 = sphi 0, %s120
      %s123 = sphi 0, %s122
      %s137 = sphi 0, %s123
      %s141 = sphi 0, %s141
      %s143 = sphi 0, %s141
      %s144 = sphi 0, %s143
      %s158 = sphi 0, %s144
      %s162 = sphi 0, %s162
      %s164 = sphi 0, %s162
      %s165 = sphi 0, %s164
      %s179 = sphi 0, %s165
      %s183 = sphi 0, %s183
      %s185 = sphi 0, %s183
      %s186 = sphi 0, %s185
      %s200 = sphi 0, %s186
      %s204 = sphi 0, %s204
      %s206 = sphi 0, %s204
      %s207 = sphi 0, %s206
      %s221 = sphi 0, %s207
      %s225 = sphi 0, %s225
      %s227 = sphi 0, %s225
      %s228 = sphi 0, %s227
      %s242 = sphi 0, %s228
      %s246 = sphi 0, %s246
      %s248 = sphi 0, %s246
      %s249 = sphi 0, %s248
      %s263 = sphi 0, %s249
      %s267 = sphi 0, %s267
      %s269 = sphi 0, %s267
      %s270 = sphi 0, %s269
      %s284 = sphi 0, %s270
      %s288 = sphi 0, %s288
      %s290 = sphi 0, %s288
      %s291 = sphi 0, %s290
      %s305 = sphi 0, %s291
      %s309 = sphi 0, %s309
      %s311 = sphi 0, %s309
      %s312 = sphi 0, %s311
      %s326 = sphi 0, %s312
      %s332 = sphi 0, %s334
      %s335 = sphi 0, %s332
      %s336 = sphi 0, %s335
      %s352 = sphi 0, %s336
    $region4: #{mlp_forward.1} parent=1 // loop_header_branch
      %26 = sbr.rel (%p24) target = $region8
    $region5: #{mlp_forward.1} parent=1 // loop_body
      %s28 = ssub.s32 %s23, 1
      %s29 = ssub.s32 %s23, 2
      %s30 = sadd.s32 %s23, 1
      %s31 = ssub.s32 %s23, %s30
      %p32 = scmp.eq.s32.totalorder %s31, 0
      %s34 = sadd.s32 %s33, 1
      %s35 = scalar_select %p32, %s33, %s34
      %p38 = pneg %p32
      %p39 = scmp.eq.s32.totalorder %s23, 1
      %p40 = por %p38, %p39
      %p41 = scmp.ne.s32.totalorder %s33, %s36
      %p42 = scmp.eq.s32.totalorder %s23, 0
      %p43 = por %p41, %p42
      %p44 = scmp.ne.s32.totalorder %s33, %s36
      %p45 = scmp.eq.s32.totalorder %s28, 1
      %p46 = por %p44, %p45
      %p47 = scmp.ne.s32.totalorder %s36, %s37
      %p48 = scmp.eq.s32.totalorder %s28, 0
      %p49 = por %p47, %p48
      %p50 = scmp.ne.s32.totalorder %s36, %s37
      %p51 = scmp.eq.s32.totalorder %s29, 1
      %p52 = por %p50, %p51
      %p54 = scmp.ne.s32.totalorder %s37, %s53
      %p55 = scmp.eq.s32.totalorder %s29, 0
      %p56 = por %p54, %p55
      %s58 = sadd.s32 %s57, 1
      %p61 = scmp.eq.s32.totalorder %s23, 1
      %p62 = scmp.ne.s32.totalorder %s57, %s59
      %p63 = scmp.eq.s32.totalorder %s23, 0
      %p64 = por %p62, %p63
      %p65 = scmp.ne.s32.totalorder %s57, %s59
      %p66 = scmp.eq.s32.totalorder %s28, 1
      %p67 = por %p65, %p66
      %p68 = scmp.ne.s32.totalorder %s59, %s60
      %p69 = scmp.eq.s32.totalorder %s28, 0
      %p70 = por %p68, %p69
      %p71 = scmp.ne.s32.totalorder %s59, %s60
      %p72 = scmp.eq.s32.totalorder %s29, 1
      %p73 = por %p71, %p72
      %p75 = scmp.ne.s32.totalorder %s60, %s74
      %p76 = scmp.eq.s32.totalorder %s29, 0
      %p77 = por %p75, %p76
      %s79 = sadd.s32 %s78, 1
      %p82 = scmp.eq.s32.totalorder %s23, 1
      %p83 = scmp.ne.s32.totalorder %s78, %s80
      %p84 = scmp.eq.s32.totalorder %s23, 0
      %p85 = por %p83, %p84
      %p86 = scmp.ne.s32.totalorder %s78, %s80
      %p87 = scmp.eq.s32.totalorder %s28, 1
      %p88 = por %p86, %p87
      %p89 = scmp.ne.s32.totalorder %s80, %s81
      %p90 = scmp.eq.s32.totalorder %s28, 0
      %p91 = por %p89, %p90
      %p92 = scmp.ne.s32.totalorder %s80, %s81
      %p93 = scmp.eq.s32.totalorder %s29, 1
      %p94 = por %p92, %p93
      %p96 = scmp.ne.s32.totalorder %s81, %s95
      %p97 = scmp.eq.s32.totalorder %s29, 0
      %p98 = por %p96, %p97
      %s100 = sadd.s32 %s99, 1
      %p103 = scmp.eq.s32.totalorder %s23, 1
      %p104 = scmp.ne.s32.totalorder %s99, %s101
      %p105 = scmp.eq.s32.totalorder %s23, 0
      %p106 = por %p104, %p105
      %p107 = scmp.ne.s32.totalorder %s99, %s101
      %p108 = scmp.eq.s32.totalorder %s28, 1
      %p109 = por %p107, %p108
      %p110 = scmp.ne.s32.totalorder %s101, %s102
      %p111 = scmp.eq.s32.totalorder %s28, 0
      %p112 = por %p110, %p111
      %p113 = scmp.ne.s32.totalorder %s101, %s102
      %p114 = scmp.eq.s32.totalorder %s29, 1
      %p115 = por %p113, %p114
      %p117 = scmp.ne.s32.totalorder %s102, %s116
      %p118 = scmp.eq.s32.totalorder %s29, 0
      %p119 = por %p117, %p118
      %s121 = sadd.s32 %s120, 1
      %p124 = scmp.eq.s32.totalorder %s23, 1
      %p125 = scmp.ne.s32.totalorder %s120, %s122
      %p126 = scmp.eq.s32.totalorder %s23, 0
      %p127 = por %p125, %p126
      %p128 = scmp.ne.s32.totalorder %s120, %s122
      %p129 = scmp.eq.s32.totalorder %s28, 1
      %p130 = por %p128, %p129
      %p131 = scmp.ne.s32.totalorder %s122, %s123
      %p132 = scmp.eq.s32.totalorder %s28, 0
      %p133 = por %p131, %p132
      %p134 = scmp.ne.s32.totalorder %s122, %s123
      %p135 = scmp.eq.s32.totalorder %s29, 1
      %p136 = por %p134, %p135
      %p138 = scmp.ne.s32.totalorder %s123, %s137
      %p139 = scmp.eq.s32.totalorder %s29, 0
      %p140 = por %p138, %p139
      %s142 = sadd.s32 %s141, 1
      %p145 = scmp.eq.s32.totalorder %s23, 1
      %p146 = scmp.ne.s32.totalorder %s141, %s143
      %p147 = scmp.eq.s32.totalorder %s23, 0
      %p148 = por %p146, %p147
      %p149 = scmp.ne.s32.totalorder %s141, %s143
      %p150 = scmp.eq.s32.totalorder %s28, 1
      %p151 = por %p149, %p150
      %p152 = scmp.ne.s32.totalorder %s143, %s144
      %p153 = scmp.eq.s32.totalorder %s28, 0
      %p154 = por %p152, %p153
      %p155 = scmp.ne.s32.totalorder %s143, %s144
      %p156 = scmp.eq.s32.totalorder %s29, 1
      %p157 = por %p155, %p156
      %p159 = scmp.ne.s32.totalorder %s144, %s158
      %p160 = scmp.eq.s32.totalorder %s29, 0
      %p161 = por %p159, %p160
      %s163 = sadd.s32 %s162, 1
      %p166 = scmp.eq.s32.totalorder %s23, 1
      %p167 = scmp.ne.s32.totalorder %s162, %s164
      %p168 = scmp.eq.s32.totalorder %s23, 0
      %p169 = por %p167, %p168
      %p170 = scmp.ne.s32.totalorder %s162, %s164
      %p171 = scmp.eq.s32.totalorder %s28, 1
      %p172 = por %p170, %p171
      %p173 = scmp.ne.s32.totalorder %s164, %s165
      %p174 = scmp.eq.s32.totalorder %s28, 0
      %p175 = por %p173, %p174
      %p176 = scmp.ne.s32.totalorder %s164, %s165
      %p177 = scmp.eq.s32.totalorder %s29, 1
      %p178 = por %p176, %p177
      %p180 = scmp.ne.s32.totalorder %s165, %s179
      %p181 = scmp.eq.s32.totalorder %s29, 0
      %p182 = por %p180, %p181
      %s184 = sadd.s32 %s183, 1
      %p187 = scmp.eq.s32.totalorder %s23, 1
      %p188 = scmp.ne.s32.totalorder %s183, %s185
      %p189 = scmp.eq.s32.totalorder %s23, 0
      %p190 = por %p188, %p189
      %p191 = scmp.ne.s32.totalorder %s183, %s185
      %p192 = scmp.eq.s32.totalorder %s28, 1
      %p193 = por %p191, %p192
      %p194 = scmp.ne.s32.totalorder %s185, %s186
      %p195 = scmp.eq.s32.totalorder %s28, 0
      %p196 = por %p194, %p195
      %p197 = scmp.ne.s32.totalorder %s185, %s186
      %p198 = scmp.eq.s32.totalorder %s29, 1
      %p199 = por %p197, %p198
      %p201 = scmp.ne.s32.totalorder %s186, %s200
      %p202 = scmp.eq.s32.totalorder %s29, 0
      %p203 = por %p201, %p202
      %s205 = sadd.s32 %s204, 1
      %p208 = scmp.eq.s32.totalorder %s23, 1
      %p209 = scmp.ne.s32.totalorder %s204, %s206
      %p210 = scmp.eq.s32.totalorder %s23, 0
      %p211 = por %p209, %p210
      %p212 = scmp.ne.s32.totalorder %s204, %s206
      %p213 = scmp.eq.s32.totalorder %s28, 1
      %p214 = por %p212, %p213
      %p215 = scmp.ne.s32.totalorder %s206, %s207
      %p216 = scmp.eq.s32.totalorder %s28, 0
      %p217 = por %p215, %p216
      %p218 = scmp.ne.s32.totalorder %s206, %s207
      %p219 = scmp.eq.s32.totalorder %s29, 1
      %p220 = por %p218, %p219
      %p222 = scmp.ne.s32.totalorder %s207, %s221
      %p223 = scmp.eq.s32.totalorder %s29, 0
      %p224 = por %p222, %p223
      %s226 = sadd.s32 %s225, 1
      %p229 = scmp.eq.s32.totalorder %s23, 1
      %p230 = scmp.ne.s32.totalorder %s225, %s227
      %p231 = scmp.eq.s32.totalorder %s23, 0
      %p232 = por %p230, %p231
      %p233 = scmp.ne.s32.totalorder %s225, %s227
      %p234 = scmp.eq.s32.totalorder %s28, 1
      %p235 = por %p233, %p234
      %p236 = scmp.ne.s32.totalorder %s227, %s228
      %p237 = scmp.eq.s32.totalorder %s28, 0
      %p238 = por %p236, %p237
      %p239 = scmp.ne.s32.totalorder %s227, %s228
      %p240 = scmp.eq.s32.totalorder %s29, 1
      %p241 = por %p239, %p240
      %p243 = scmp.ne.s32.totalorder %s228, %s242
      %p244 = scmp.eq.s32.totalorder %s29, 0
      %p245 = por %p243, %p244
      %s247 = sadd.s32 %s246, 1
      %p250 = scmp.eq.s32.totalorder %s23, 1
      %p251 = scmp.ne.s32.totalorder %s246, %s248
      %p252 = scmp.eq.s32.totalorder %s23, 0
      %p253 = por %p251, %p252
      %p254 = scmp.ne.s32.totalorder %s246, %s248
      %p255 = scmp.eq.s32.totalorder %s28, 1
      %p256 = por %p254, %p255
      %p257 = scmp.ne.s32.totalorder %s248, %s249
      %p258 = scmp.eq.s32.totalorder %s28, 0
      %p259 = por %p257, %p258
      %p260 = scmp.ne.s32.totalorder %s248, %s249
      %p261 = scmp.eq.s32.totalorder %s29, 1
      %p262 = por %p260, %p261
      %p264 = scmp.ne.s32.totalorder %s249, %s263
      %p265 = scmp.eq.s32.totalorder %s29, 0
      %p266 = por %p264, %p265
      %s268 = sadd.s32 %s267, 1
      %p271 = scmp.eq.s32.totalorder %s23, 1
      %p272 = scmp.ne.s32.totalorder %s267, %s269
      %p273 = scmp.eq.s32.totalorder %s23, 0
      %p274 = por %p272, %p273
      %p275 = scmp.ne.s32.totalorder %s267, %s269
      %p276 = scmp.eq.s32.totalorder %s28, 1
      %p277 = por %p275, %p276
      %p278 = scmp.ne.s32.totalorder %s269, %s270
      %p279 = scmp.eq.s32.totalorder %s28, 0
      %p280 = por %p278, %p279
      %p281 = scmp.ne.s32.totalorder %s269, %s270
      %p282 = scmp.eq.s32.totalorder %s29, 1
      %p283 = por %p281, %p282
      %p285 = scmp.ne.s32.totalorder %s270, %s284
      %p286 = scmp.eq.s32.totalorder %s29, 0
      %p287 = por %p285, %p286
      %s289 = sadd.s32 %s288, 1
      %p292 = scmp.eq.s32.totalorder %s23, 1
      %p293 = scmp.ne.s32.totalorder %s288, %s290
      %p294 = scmp.eq.s32.totalorder %s23, 0
      %p295 = por %p293, %p294
      %p296 = scmp.ne.s32.totalorder %s288, %s290
      %p297 = scmp.eq.s32.totalorder %s28, 1
      %p298 = por %p296, %p297
      %p299 = scmp.ne.s32.totalorder %s290, %s291
      %p300 = scmp.eq.s32.totalorder %s28, 0
      %p301 = por %p299, %p300
      %p302 = scmp.ne.s32.totalorder %s290, %s291
      %p303 = scmp.eq.s32.totalorder %s29, 1
      %p304 = por %p302, %p303
      %p306 = scmp.ne.s32.totalorder %s291, %s305
      %p307 = scmp.eq.s32.totalorder %s29, 0
      %p308 = por %p306, %p307
      %s310 = sadd.s32 %s309, 1
      %p313 = scmp.eq.s32.totalorder %s23, 1
      %p314 = scmp.ne.s32.totalorder %s309, %s311
      %p315 = scmp.eq.s32.totalorder %s23, 0
      %p316 = por %p314, %p315
      %p317 = scmp.ne.s32.totalorder %s309, %s311
      %p318 = scmp.eq.s32.totalorder %s28, 1
      %p319 = por %p317, %p318
      %p320 = scmp.ne.s32.totalorder %s311, %s312
      %p321 = scmp.eq.s32.totalorder %s28, 0
      %p322 = por %p320, %p321
      %p323 = scmp.ne.s32.totalorder %s311, %s312
      %p324 = scmp.eq.s32.totalorder %s29, 1
      %p325 = por %p323, %p324
      %p327 = scmp.ne.s32.totalorder %s312, %s326
      %p328 = scmp.eq.s32.totalorder %s29, 0
      %p329 = por %p327, %p328
      %s330 = ssub.s32 %s23, %s30
      %p331 = scmp.eq.s32.totalorder %s330, 0
      %s333 = sadd.s32 %s332, 1
      %s334 = scalar_select %p331, %s332, %s333
      %p337 = pneg %p331
      %p338 = scmp.eq.s32.totalorder %s23, 1
      %p339 = por %p337, %p338
      %p340 = scmp.ne.s32.totalorder %s332, %s335
      %p341 = scmp.eq.s32.totalorder %s23, 0
      %p342 = por %p340, %p341
      %p343 = scmp.ne.s32.totalorder %s332, %s335
      %p344 = scmp.eq.s32.totalorder %s28, 1
      %p345 = por %p343, %p344
      %p346 = scmp.ne.s32.totalorder %s335, %s336
      %p347 = scmp.eq.s32.totalorder %s28, 0
      %p348 = por %p346, %p347
      %p349 = scmp.ne.s32.totalorder %s335, %s336
      %p350 = scmp.eq.s32.totalorder %s29, 1
      %p351 = por %p349, %p350
      %p353 = scmp.ne.s32.totalorder %s336, %s352
      %p354 = scmp.eq.s32.totalorder %s29, 0
      %p355 = por %p353, %p354
      %p356 = scmp.le.s32.totalorder 1, %s23
      %p357 = scmp.lt.s32.totalorder %s23, 3
      %p358 = pnand %p356, %p357
      %p359 = pneg %p358
      // Predicated region
      $region9: #{mlp_forward.1} parent=5 // pred_check
        _
      $region10: #{mlp_forward.1} parent=5 // pred_check_branch
        %361 = sbr.rel (%p358) target = $region12
      $region11: #{mlp_forward.1} parent=5 // pred_region
        %s362 = ssub.s32 %s23, 1
        // Predicated region
        $region13: #{mlp_forward.1} parent=11 // pred_check
          %p363 = pneg %p70
        $region14: #{mlp_forward.1} parent=11 // pred_check_branch
          %365 = sbr.rel (%p363) target = $region16
        $region15: #{mlp_forward.1} parent=11 // pred_region
          _
        $region16: #{mlp_forward.1} parent=11 // pred_fallthru
          _
        // Predicated region
        $region17: #{mlp_forward.1} parent=11 // pred_check
          %p366 = pneg %p91
        $region18: #{mlp_forward.1} parent=11 // pred_check_branch
          %368 = sbr.rel (%p366) target = $region20
        $region19: #{mlp_forward.1} parent=11 // pred_region
          _
        $region20: #{mlp_forward.1} parent=11 // pred_fallthru
          _
        // Predicated region
        $region21: #{mlp_forward.1} parent=11 // pred_check
          %p369 = pneg %p112
        $region22: #{mlp_forward.1} parent=11 // pred_check_branch
          %371 = sbr.rel (%p369) target = $region24
        $region23: #{mlp_forward.1} parent=11 // pred_region
          %s373 = ssub.s32 8192, 8192
          %374 = vsyncadd [#allocation3], %s373
          %s375 = sshll.u32 [#allocation2], 4
          %s376 = int_to_ptr.vmem [resolvable:$true] %s375
          %381 = dma.hbm_to_vmem [thread:$0]  %s3, 8192, %s376, [#allocation3], 128, 128, 8
        $region24: #{mlp_forward.1} parent=11 // pred_fallthru
          _
        // Predicated region
        $region25: #{mlp_forward.1} parent=11 // pred_check
          %p382 = pneg %p133
        $region26: #{mlp_forward.1} parent=11 // pred_check_branch
          %384 = sbr.rel (%p382) target = $region28
        $region27: #{mlp_forward.1} parent=11 // pred_region
          _
        $region28: #{mlp_forward.1} parent=11 // pred_fallthru
          _
        // Predicated region
        $region29: #{mlp_forward.1} parent=11 // pred_check
          %p385 = pneg %p154
        $region30: #{mlp_forward.1} parent=11 // pred_check_branch
          %387 = sbr.rel (%p385) target = $region32
        $region31: #{mlp_forward.1} parent=11 // pred_region
          %s389 = ssub.s32 8192, 8192
          %390 = vsyncadd [#allocation5], %s389
          %s391 = sshll.u32 [#allocation4], 4
          %s392 = int_to_ptr.vmem [resolvable:$true] %s391
          %397 = dma.hbm_to_vmem [thread:$0]  %s5, 8192, %s392, [#allocation5], 256, 256, 16
        $region32: #{mlp_forward.1} parent=11 // pred_fallthru
          _
        // Predicated region
        $region33: #{mlp_forward.1} parent=11 // pred_check
          %p398 = pneg %p175
        $region34: #{mlp_forward.1} parent=11 // pred_check_branch
          %400 = sbr.rel (%p398) target = $region36
        $region35: #{mlp_forward.1} parent=11 // pred_region
          _
        $region36: #{mlp_forward.1} parent=11 // pred_fallthru
          _
        // Predicated region
        $region37: #{mlp_forward.1} parent=11 // pred_check
          %p401 = pneg %p196
        $region38: #{mlp_forward.1} parent=11 // pred_check_branch
          %403 = sbr.rel (%p401) target = $region40
        $region39: #{mlp_forward.1} parent=11 // pred_region
          %s405 = ssub.s32 8192, 8192
          %406 = vsyncadd [#allocation5], %s405
          %s407 = sshll.u32 [#allocation6], 4
          %s408 = int_to_ptr.vmem [resolvable:$true] %s407
          %413 = dma.hbm_to_vmem [thread:$0]  %s7, 8192, %s408, [#allocation5], 128, 128, 8
        $region40: #{mlp_forward.1} parent=11 // pred_fallthru
          _
        // Predicated region
        $region41: #{mlp_forward.1} parent=11 // pred_check
          %p414 = pneg %p217
        $region42: #{mlp_forward.1} parent=11 // pred_check_branch
          %416 = sbr.rel (%p414) target = $region44
        $region43: #{mlp_forward.1} parent=11 // pred_region
          _
        $region44: #{mlp_forward.1} parent=11 // pred_fallthru
          _
        // Predicated region
        $region45: #{mlp_forward.1} parent=11 // pred_check
          %p417 = pneg %p238
        $region46: #{mlp_forward.1} parent=11 // pred_check_branch
          %419 = sbr.rel (%p417) target = $region48
        $region47: #{mlp_forward.1} parent=11 // pred_region
          %s421 = ssub.s32 8192, 8192
          %422 = vsyncadd [#allocation8], %s421
          %s423 = sshll.u32 [#allocation7], 4
          %s424 = int_to_ptr.vmem [resolvable:$true] %s423
          %429 = dma.hbm_to_vmem [thread:$0]  %s9, 8192, %s424, [#allocation8], 128, 128, 8
        $region48: #{mlp_forward.1} parent=11 // pred_fallthru
          _
        // Predicated region
        $region49: #{mlp_forward.1} parent=11 // pred_check
          %p430 = pneg %p259
        $region50: #{mlp_forward.1} parent=11 // pred_check_branch
          %432 = sbr.rel (%p430) target = $region52
        $region51: #{mlp_forward.1} parent=11 // pred_region
          _
        $region52: #{mlp_forward.1} parent=11 // pred_fallthru
          _
        // Predicated region
        $region53: #{mlp_forward.1} parent=11 // pred_check
          %p433 = pneg %p280
        $region54: #{mlp_forward.1} parent=11 // pred_check_branch
          %435 = sbr.rel (%p433) target = $region56
        $region55: #{mlp_forward.1} parent=11 // pred_region
          _
        $region56: #{mlp_forward.1} parent=11 // pred_fallthru
          _
        // Predicated region
        $region57: #{mlp_forward.1} parent=11 // pred_check
          %p436 = pneg %p301
        $region58: #{mlp_forward.1} parent=11 // pred_check_branch
          %438 = sbr.rel (%p436) target = $region60
        $region59: #{mlp_forward.1} parent=11 // pred_region
          _
        $region60: #{mlp_forward.1} parent=11 // pred_fallthru
          _
        // Predicated region
        $region61: #{mlp_forward.1} parent=11 // pred_check
          %p439 = pneg %p322
        $region62: #{mlp_forward.1} parent=11 // pred_check_branch
          %441 = sbr.rel (%p439) target = $region64
        $region63: #{mlp_forward.1} parent=11 // pred_region
          _
        $region64: #{mlp_forward.1} parent=11 // pred_fallthru
          _
      $region12: #{mlp_forward.1} parent=5 // pred_fallthru
        _
      %p442 = scmp.lt.s32.totalorder %s23, 2
      // Predicated region
      $region65: #{mlp_forward.1} parent=5 // pred_check
        %p443 = pneg %p442
      $region66: #{mlp_forward.1} parent=5 // pred_check_branch
        %445 = sbr.rel (%p443) target = $region68
      $region67: #{mlp_forward.1} parent=5 // pred_region
        // Predicated region
        $region69: #{mlp_forward.1} parent=67 // pred_check
          %p446 = pneg %p43
        $region70: #{mlp_forward.1} parent=67 // pred_check_branch
          %448 = sbr.rel (%p446) target = $region72
        $region71: #{mlp_forward.1} parent=67 // pred_region
          %p449 = scmp.lt.s32.totalorder %s23, 1
          %s450 = scalar_select %p449, %s23, 1
          %s451 = smul.addr %s450, 4
          %s452 = scalar_lea.vmem %s0, %s451
        $region72: #{mlp_forward.1} parent=67 // pred_fallthru
          _
      $region68: #{mlp_forward.1} parent=5 // pred_fallthru
        _
      %p453 = scmp.le.s32.totalorder 1, %s23
      %p454 = scmp.lt.s32.totalorder %s23, 3
      %p455 = pnand %p453, %p454
      %p456 = pneg %p455
      // Predicated region
      $region73: #{mlp_forward.1} parent=5 // pred_check
        _
      $region74: #{mlp_forward.1} parent=5 // pred_check_branch
        %458 = sbr.rel (%p455) target = $region76
      $region75: #{mlp_forward.1} parent=5 // pred_region
        %s459 = ssub.s32 %s23, 1
        // Predicated region
        $region77: #{mlp_forward.1} parent=75 // pred_check
          %p460 = pneg %p112
        $region78: #{mlp_forward.1} parent=75 // pred_check_branch
          %462 = sbr.rel (%p460) target = $region80
        $region79: #{mlp_forward.1} parent=75 // pred_region
          %463 = dma.done [#allocation3], 8192
        $region80: #{mlp_forward.1} parent=75 // pred_fallthru
          _
        // Predicated region
        $region81: #{mlp_forward.1} parent=75 // pred_check
          %p464 = pneg %p154
        $region82: #{mlp_forward.1} parent=75 // pred_check_branch
          %466 = sbr.rel (%p464) target = $region84
        $region83: #{mlp_forward.1} parent=75 // pred_region
          %467 = dma.done [#allocation5], 8192
        $region84: #{mlp_forward.1} parent=75 // pred_fallthru
          _
        // Predicated region
        $region85: #{mlp_forward.1} parent=75 // pred_check
          %p468 = pneg %p196
        $region86: #{mlp_forward.1} parent=75 // pred_check_branch
          %470 = sbr.rel (%p468) target = $region88
        $region87: #{mlp_forward.1} parent=75 // pred_region
          %471 = dma.done [#allocation5], 8192
        $region88: #{mlp_forward.1} parent=75 // pred_fallthru
          _
        // Predicated region
        $region89: #{mlp_forward.1} parent=75 // pred_check
          %p472 = pneg %p238
        $region90: #{mlp_forward.1} parent=75 // pred_check_branch
          %474 = sbr.rel (%p472) target = $region92
        $region91: #{mlp_forward.1} parent=75 // pred_region
          %475 = dma.done [#allocation8], 8192
        $region92: #{mlp_forward.1} parent=75 // pred_fallthru
          _
        %p476 = scmp.lt.s32.totalorder %s28, 1
        %s477 = scalar_select %p476, %s28, 1
        %s478 = smul.addr %s477, 4
        %s479 = scalar_lea.vmem %s0, %s478
        %p480 = pneg %p49
        %p481 = pneg %p46
        %p482 = pneg %p70
        %p483 = pneg %p67
        %p484 = pneg %p91
        %p485 = pneg %p88
        %p486 = pneg %p112
        %p487 = pneg %p109
        %p488 = pneg %p133
        %p489 = pneg %p130
        %p490 = pneg %p154
        %p491 = pneg %p151
        %p492 = pneg %p175
        %p493 = pneg %p172
        %p494 = pneg %p196
        %p495 = pneg %p193
        %p496 = pneg %p217
        %p497 = pneg %p214
        %p498 = pneg %p238
        %p499 = pneg %p235
        %p500 = pneg %p259
        %p501 = pneg %p256
        %p502 = pneg %p280
        %p503 = pneg %p277
        %p504 = pneg %p301
        %p505 = pneg %p298
        %p506 = pneg %p322
        %p507 = pneg %p319
        %p508 = pneg %p348
        %p509 = pneg %p345
        %p510 = scmp.lt.s32.totalorder %s28, 1
        %s511 = scalar_select %p510, %s28, 1
        %s512 = smul.addr %s511, 8
        %s513 = scalar_lea.vmem %s14, %s512
        %p514 = scmp.lt.s32.totalorder %s28, 1
        %s515 = scalar_select %p514, %s28, 1
        %s516 = smul.addr %s515, 4
        %s517 = scalar_lea.vmem %s0, %s516
        %p518 = scmp.lt.s32.totalorder %s28, 1
        %s519 = scalar_select %p518, %s28, 1
        %s520 = smul.addr %s519, 8
        %s521 = scalar_lea.vmem %s14, %s520
        %v524 = vld [vmem:[%s517] sm:$0xf]
        %v525 = vld [vmem:[%s1] sm:$0xff]
        %v526 = vld [vmem:[%s1 + $0x8] sm:$0xff]
        %v527 = vld [vmem:[%s2] sm:$0x3]
        %v529 = vlaneseq
        %v530 = vshrl.u32 %v529, 7
        %v531 = vsub.s32 0, %v530
        %v532 = vrot.slane %v527, %v531
        %v533 = vlaneseq
        %v534 = vshrl.u32 %v533, 7
        %v535 = vsub.s32 1, %v534
        %v536 = vrot.slane %v527, %v535
        %v541 = vunpack.c.l.b16 %v525
        %v542 = vunpack.c.h.b16 %v525
        %v543 = vunpack.c.l.b16 %v526
        %v544 = vunpack.c.h.b16 %v526
        %v545 = vpack.c.b16 %v543, %v541
        %v546 = vpack.c.b16 %v544, %v542
        %vm549 = vcmask 130048
        %v551 = vsel %vm549, %v524, 0
        %553 = vmatprep.subr.bf16.mxu0 0
        %554 = vmatpush1.bf16.msra.mxu0 0
        %555 = vmatprep.subr.bf16.mxu0 0
        %556 = vmatpush1.bf16.msra.mxu0 0
        %557 = vmatprep.subr.bf16.mxu0 0
        %558 = vmatpush1.bf16.msra.mxu0 0
        %559 = vmatprep.subr.bf16.mxu0 0
        %560 = vmatpush1.bf16.msra.mxu0 0
        %561 = vmatprep.subr.bf16.mxu0 0
        %562 = vmatpush1.bf16.msra.mxu0 0
        %563 = vmatprep.subr.bf16.mxu0 0
        %564 = vmatpush1.bf16.msra.mxu0 0
        %565 = vmatprep.subr.bf16.mxu0 0
        %566 = vmatpush1.bf16.msra.mxu0 0
        %567 = vmatprep.subr.bf16.mxu0 %v546
        %568 = vmatpush1.bf16.msra.mxu0 %v545
        %569 = vmatprep.subr.bf16.mxu0 0
        %570 = vmatpush2.bf16.msra.mxu0 0
        %571 = vmatprep.subr.bf16.mxu0 0
        %572 = vmatpush2.bf16.msra.mxu0 0
        %573 = vmatprep.subr.bf16.mxu0 0
        %574 = vmatpush2.bf16.msra.mxu0 0
        %575 = vmatprep.subr.bf16.mxu0 0
        %576 = vmatpush2.bf16.msra.mxu0 0
        %577 = vmatprep.subr.bf16.mxu0 0
        %578 = vmatpush2.bf16.msra.mxu0 0
        %579 = vmatprep.subr.bf16.mxu0 0
        %580 = vmatpush2.bf16.msra.mxu0 0
        %581 = vmatprep.subr.bf16.mxu0 0
        %582 = vmatpush2.bf16.msra.mxu0 0
        %583 = vmatprep.subr.bf16.mxu0 0
        %584 = vmatpush2.bf16.msra.mxu0 0
        %585 = vmatprep.mubr.bf16.mxu0 0
        %586 = vmatmul.mubr.bf16.gmra.mxu0 %v551
        %v587 = vpop.f32.mrf.mxu0
        %v588 = vadd.f32 %v532, %v587
        %v589 = vpop.f32.mrf.mxu0
        %v590 = vadd.f32 %v536, %v589
        %v591 = vpop.f32.mrf.mxu0
        %v592 = vpop.f32.mrf.mxu0
        %593 = vdwg.mxu0
        %v594 = vpack.c.bf16 %v588, %v588
        %v595 = vpack.c.bf16 %v590, %v590
        %v596 = vxor.u32 %v594, 2147516416
        %v597 = vxor.u32 %v595, 2147516416
        %v599 = vmul.bf16 %v596, 1069105081
        %v600 = vpow.bf16.pop %v599
        %v602 = vmul.bf16 %v597, 1069105081
        %v603 = vpow.bf16.pop %v602
        %v604 = vadd.bf16 %v600, 1065369472
        %v605 = vadd.bf16 %v603, 1065369472
        %v606 = vrcp.bf16.pop %v604
        %v607 = vmul.bf16 1065369472, %v606
        %v608 = vrcp.bf16.pop %v605
        %v609 = vmul.bf16 1065369472, %v608
        %v610 = vmul.bf16 %v607, %v594
        %v611 = vmul.bf16 %v609, %v595
        %v612 = vld [vmem:[#allocation2] sm:$0xff]
        %v613 = vld [vmem:[#allocation2 + $0x8] sm:$0xff]
        %v614 = vld [vmem:[#allocation2 + $0x10] sm:$0xff]
        %v615 = vld [vmem:[#allocation2 + $0x18] sm:$0xff]
        %v616 = vld [vmem:[#allocation2 + $0x20] sm:$0xff]
        %v617 = vld [vmem:[#allocation2 + $0x28] sm:$0xff]
        %v618 = vld [vmem:[#allocation2 + $0x30] sm:$0xff]
        %v619 = vld [vmem:[#allocation2 + $0x38] sm:$0xff]
        %v620 = vld [vmem:[#allocation2 + $0x40] sm:$0xff]
        %v621 = vld [vmem:[#allocation2 + $0x48] sm:$0xff]
        %v622 = vld [vmem:[#allocation2 + $0x50] sm:$0xff]
        %v623 = vld [vmem:[#allocation2 + $0x58] sm:$0xff]
        %v624 = vld [vmem:[#allocation2 + $0x60] sm:$0xff]
        %v625 = vld [vmem:[#allocation2 + $0x68] sm:$0xff]
        %v626 = vld [vmem:[#allocation2 + $0x70] sm:$0xff]
        %v627 = vld [vmem:[#allocation2 + $0x78] sm:$0xff]
        %v628 = vld [vmem:[#allocation2 + $0x80] sm:$0xff]
        %v629 = vld [vmem:[#allocation2 + $0x88] sm:$0xff]
        %v630 = vld [vmem:[#allocation2 + $0x90] sm:$0xff]
        %v631 = vld [vmem:[#allocation2 + $0x98] sm:$0xff]
        %v632 = vld [vmem:[#allocation2 + $0xa0] sm:$0xff]
        %v633 = vld [vmem:[#allocation2 + $0xa8] sm:$0xff]
        %v634 = vld [vmem:[#allocation2 + $0xb0] sm:$0xff]
        %v635 = vld [vmem:[#allocation2 + $0xb8] sm:$0xff]
        %v636 = vld [vmem:[#allocation2 + $0xc0] sm:$0xff]
        %v637 = vld [vmem:[#allocation2 + $0xc8] sm:$0xff]
        %v638 = vld [vmem:[#allocation2 + $0xd0] sm:$0xff]
        %v639 = vld [vmem:[#allocation2 + $0xd8] sm:$0xff]
        %v640 = vld [vmem:[#allocation2 + $0xe0] sm:$0xff]
        %v641 = vld [vmem:[#allocation2 + $0xe8] sm:$0xff]
        %v642 = vld [vmem:[#allocation2 + $0xf0] sm:$0xff]
        %v643 = vld [vmem:[#allocation2 + $0xf8] sm:$0xff]
        %v644 = vld [vmem:[%s4] sm:$0x3]
        %v646 = vlaneseq
        %v647 = vshrl.u32 %v646, 7
        %v648 = vsub.s32 0, %v647
        %v649 = vrot.slane %v644, %v648
        %v650 = vlaneseq
        %v651 = vshrl.u32 %v650, 7
        %v652 = vsub.s32 1, %v651
        %v653 = vrot.slane %v644, %v652
        %v688 = vunpack.c.l.b16 %v612
        %v689 = vunpack.c.h.b16 %v612
        %v690 = vunpack.c.l.b16 %v613
        %v691 = vunpack.c.h.b16 %v613
        %v692 = vunpack.c.l.b16 %v614
        %v693 = vunpack.c.h.b16 %v614
        %v694 = vunpack.c.l.b16 %v615
        %v695 = vunpack.c.h.b16 %v615
        %v696 = vunpack.c.l.b16 %v616
        %v697 = vunpack.c.h.b16 %v616
        %v698 = vunpack.c.l.b16 %v617
        %v699 = vunpack.c.h.b16 %v617
        %v700 = vunpack.c.l.b16 %v618
        %v701 = vunpack.c.h.b16 %v618
        %v702 = vunpack.c.l.b16 %v619
        %v703 = vunpack.c.h.b16 %v619
        %v704 = vunpack.c.l.b16 %v620
        %v705 = vunpack.c.h.b16 %v620
        %v706 = vunpack.c.l.b16 %v621
        %v707 = vunpack.c.h.b16 %v621
        %v708 = vunpack.c.l.b16 %v622
        %v709 = vunpack.c.h.b16 %v622
        %v710 = vunpack.c.l.b16 %v623
        %v711 = vunpack.c.h.b16 %v623
        %v712 = vunpack.c.l.b16 %v624
        %v713 = vunpack.c.h.b16 %v624
        %v714 = vunpack.c.l.b16 %v625
        %v715 = vunpack.c.h.b16 %v625
        %v716 = vunpack.c.l.b16 %v626
        %v717 = vunpack.c.h.b16 %v626
        %v718 = vunpack.c.l.b16 %v627
        %v719 = vunpack.c.h.b16 %v627
        %v720 = vunpack.c.l.b16 %v628
        %v721 = vunpack.c.h.b16 %v628
        %v722 = vunpack.c.l.b16 %v629
        %v723 = vunpack.c.h.b16 %v629
        %v724 = vunpack.c.l.b16 %v630
        %v725 = vunpack.c.h.b16 %v630
        %v726 = vunpack.c.l.b16 %v631
        %v727 = vunpack.c.h.b16 %v631
        %v728 = vunpack.c.l.b16 %v632
        %v729 = vunpack.c.h.b16 %v632
        %v730 = vunpack.c.l.b16 %v633
        %v731 = vunpack.c.h.b16 %v633
        %v732 = vunpack.c.l.b16 %v634
        %v733 = vunpack.c.h.b16 %v634
        %v734 = vunpack.c.l.b16 %v635
        %v735 = vunpack.c.h.b16 %v635
        %v736 = vunpack.c.l.b16 %v636
        %v737 = vunpack.c.h.b16 %v636
        %v738 = vunpack.c.l.b16 %v637
        %v739 = vunpack.c.h.b16 %v637
        %v740 = vunpack.c.l.b16 %v638
        %v741 = vunpack.c.h.b16 %v638
        %v742 = vunpack.c.l.b16 %v639
        %v743 = vunpack.c.h.b16 %v639
        %v744 = vunpack.c.l.b16 %v640
        %v745 = vunpack.c.h.b16 %v640
        %v746 = vunpack.c.l.b16 %v641
        %v747 = vunpack.c.h.b16 %v641
        %v748 = vunpack.c.l.b16 %v642
        %v749 = vunpack.c.h.b16 %v642
        %v750 = vunpack.c.l.b16 %v643
        %v751 = vunpack.c.h.b16 %v643
        %v752 = vpack.c.b16 %v690, %v688
        %v753 = vpack.c.b16 %v691, %v689
        %v754 = vpack.c.b16 %v694, %v692
        %v755 = vpack.c.b16 %v695, %v693
        %v756 = vpack.c.b16 %v698, %v696
        %v757 = vpack.c.b16 %v699, %v697
        %v758 = vpack.c.b16 %v702, %v700
        %v759 = vpack.c.b16 %v703, %v701
        %v760 = vpack.c.b16 %v706, %v704
        %v761 = vpack.c.b16 %v707, %v705
        %v762 = vpack.c.b16 %v710, %v708
        %v763 = vpack.c.b16 %v711, %v709
        %v764 = vpack.c.b16 %v714, %v712
        %v765 = vpack.c.b16 %v715, %v713
        %v766 = vpack.c.b16 %v718, %v716
        %v767 = vpack.c.b16 %v719, %v717
        %v768 = vpack.c.b16 %v722, %v720
        %v769 = vpack.c.b16 %v723, %v721
        %v770 = vpack.c.b16 %v726, %v724
        %v771 = vpack.c.b16 %v727, %v725
        %v772 = vpack.c.b16 %v730, %v728
        %v773 = vpack.c.b16 %v731, %v729
        %v774 = vpack.c.b16 %v734, %v732
        %v775 = vpack.c.b16 %v735, %v733
        %v776 = vpack.c.b16 %v738, %v736
        %v777 = vpack.c.b16 %v739, %v737
        %v778 = vpack.c.b16 %v742, %v740
        %v779 = vpack.c.b16 %v743, %v741
        %v780 = vpack.c.b16 %v746, %v744
        %v781 = vpack.c.b16 %v747, %v745
        %v782 = vpack.c.b16 %v750, %v748
        %v783 = vpack.c.b16 %v751, %v749
        %816 = vmatprep.subr.bf16.mxu0 %v767
        %817 = vmatpush1.bf16.msra.mxu0 %v766
        %818 = vmatprep.subr.bf16.mxu0 %v765
        %819 = vmatpush1.bf16.msra.mxu0 %v764
        %820 = vmatprep.subr.bf16.mxu0 %v763
        %821 = vmatpush1.bf16.msra.mxu0 %v762
        %822 = vmatprep.subr.bf16.mxu0 %v761
        %823 = vmatpush1.bf16.msra.mxu0 %v760
        %824 = vmatprep.subr.bf16.mxu0 %v759
        %825 = vmatpush1.bf16.msra.mxu0 %v758
        %826 = vmatprep.subr.bf16.mxu0 %v757
        %827 = vmatpush1.bf16.msra.mxu0 %v756
        %828 = vmatprep.subr.bf16.mxu0 %v755
        %829 = vmatpush1.bf16.msra.mxu0 %v754
        %830 = vmatprep.subr.bf16.mxu0 %v753
        %831 = vmatpush1.bf16.msra.mxu0 %v752
        %832 = vmatprep.subr.bf16.mxu0 %v783
        %833 = vmatpush2.bf16.msra.mxu0 %v782
        %834 = vmatprep.subr.bf16.mxu0 %v781
        %835 = vmatpush2.bf16.msra.mxu0 %v780
        %836 = vmatprep.subr.bf16.mxu0 %v779
        %837 = vmatpush2.bf16.msra.mxu0 %v778
        %838 = vmatprep.subr.bf16.mxu0 %v777
        %839 = vmatpush2.bf16.msra.mxu0 %v776
        %840 = vmatprep.subr.bf16.mxu0 %v775
        %841 = vmatpush2.bf16.msra.mxu0 %v774
        %842 = vmatprep.subr.bf16.mxu0 %v773
        %843 = vmatpush2.bf16.msra.mxu0 %v772
        %844 = vmatprep.subr.bf16.mxu0 %v771
        %845 = vmatpush2.bf16.msra.mxu0 %v770
        %846 = vmatprep.subr.bf16.mxu0 %v769
        %847 = vmatpush2.bf16.msra.mxu0 %v768
        %848 = vmatprep.mubr.bf16.mxu0 %v611
        %849 = vmatmul.mubr.bf16.gmra.mxu0 %v610
        %v850 = vpop.f32.mrf.mxu0
        %v851 = vadd.f32 %v649, %v850
        %v852 = vpop.f32.mrf.mxu0
        %v853 = vadd.f32 %v653, %v852
        %v854 = vpop.f32.mrf.mxu0
        %v855 = vpop.f32.mrf.mxu0
        %856 = vdwg.mxu0
        %v857 = vpack.c.bf16 %v851, %v851
        %v858 = vpack.c.bf16 %v853, %v853
        %v859 = vxor.u32 %v857, 2147516416
        %v860 = vxor.u32 %v858, 2147516416
        %v862 = vmul.bf16 %v859, 1069105081
        %v863 = vpow.bf16.pop %v862
        %v865 = vmul.bf16 %v860, 1069105081
        %v866 = vpow.bf16.pop %v865
        %v867 = vadd.bf16 %v863, 1065369472
        %v868 = vadd.bf16 %v866, 1065369472
        %v869 = vrcp.bf16.pop %v867
        %v870 = vmul.bf16 1065369472, %v869
        %v871 = vrcp.bf16.pop %v868
        %v872 = vmul.bf16 1065369472, %v871
        %v873 = vmul.bf16 %v870, %v857
        %v874 = vmul.bf16 %v872, %v858
        %s875 = scalar_lea.vmem [#allocation2], 256
        %v876 = vld [vmem:[%s875] sm:$0xff]
        %v877 = vld [vmem:[%s875 + $0x8] sm:$0xff]
        %v878 = vld [vmem:[%s875 + $0x10] sm:$0xff]
        %v879 = vld [vmem:[%s875 + $0x18] sm:$0xff]
        %v880 = vld [vmem:[%s875 + $0x20] sm:$0xff]
        %v881 = vld [vmem:[%s875 + $0x28] sm:$0xff]
        %v882 = vld [vmem:[%s875 + $0x30] sm:$0xff]
        %v883 = vld [vmem:[%s875 + $0x38] sm:$0xff]
        %v884 = vld [vmem:[%s875 + $0x40] sm:$0xff]
        %v885 = vld [vmem:[%s875 + $0x48] sm:$0xff]
        %v886 = vld [vmem:[%s875 + $0x50] sm:$0xff]
        %v887 = vld [vmem:[%s875 + $0x58] sm:$0xff]
        %v888 = vld [vmem:[%s875 + $0x60] sm:$0xff]
        %v889 = vld [vmem:[%s875 + $0x68] sm:$0xff]
        %v890 = vld [vmem:[%s875 + $0x70] sm:$0xff]
        %v891 = vld [vmem:[%s875 + $0x78] sm:$0xff]
        %v892 = vld [vmem:[%s875 + $0x80] sm:$0xff]
        %v893 = vld [vmem:[%s875 + $0x88] sm:$0xff]
        %v894 = vld [vmem:[%s875 + $0x90] sm:$0xff]
        %v895 = vld [vmem:[%s875 + $0x98] sm:$0xff]
        %v896 = vld [vmem:[%s875 + $0xa0] sm:$0xff]
        %v897 = vld [vmem:[%s875 + $0xa8] sm:$0xff]
        %v898 = vld [vmem:[%s875 + $0xb0] sm:$0xff]
        %v899 = vld [vmem:[%s875 + $0xb8] sm:$0xff]
        %v900 = vld [vmem:[%s875 + $0xc0] sm:$0xff]
        %v901 = vld [vmem:[%s875 + $0xc8] sm:$0xff]
        %v902 = vld [vmem:[%s875 + $0xd0] sm:$0xff]
        %v903 = vld [vmem:[%s875 + $0xd8] sm:$0xff]
        %v904 = vld [vmem:[%s875 + $0xe0] sm:$0xff]
        %v905 = vld [vmem:[%s875 + $0xe8] sm:$0xff]
        %v906 = vld [vmem:[%s875 + $0xf0] sm:$0xff]
        %v907 = vld [vmem:[%s875 + $0xf8] sm:$0xff]
        %s908 = scalar_lea.vmem %s4, 2
        %v909 = vld [vmem:[%s908] sm:$0x3]
        %v911 = vlaneseq
        %v912 = vshrl.u32 %v911, 7
        %v913 = vsub.s32 0, %v912
        %v914 = vrot.slane %v909, %v913
        %v915 = vlaneseq
        %v916 = vshrl.u32 %v915, 7
        %v917 = vsub.s32 1, %v916
        %v918 = vrot.slane %v909, %v917
        %v953 = vunpack.c.l.b16 %v876
        %v954 = vunpack.c.h.b16 %v876
        %v955 = vunpack.c.l.b16 %v877
        %v956 = vunpack.c.h.b16 %v877
        %v957 = vunpack.c.l.b16 %v878
        %v958 = vunpack.c.h.b16 %v878
        %v959 = vunpack.c.l.b16 %v879
        %v960 = vunpack.c.h.b16 %v879
        %v961 = vunpack.c.l.b16 %v880
        %v962 = vunpack.c.h.b16 %v880
        %v963 = vunpack.c.l.b16 %v881
        %v964 = vunpack.c.h.b16 %v881
        %v965 = vunpack.c.l.b16 %v882
        %v966 = vunpack.c.h.b16 %v882
        %v967 = vunpack.c.l.b16 %v883
        %v968 = vunpack.c.h.b16 %v883
        %v969 = vunpack.c.l.b16 %v884
        %v970 = vunpack.c.h.b16 %v884
        %v971 = vunpack.c.l.b16 %v885
        %v972 = vunpack.c.h.b16 %v885
        %v973 = vunpack.c.l.b16 %v886
        %v974 = vunpack.c.h.b16 %v886
        %v975 = vunpack.c.l.b16 %v887
        %v976 = vunpack.c.h.b16 %v887
        %v977 = vunpack.c.l.b16 %v888
        %v978 = vunpack.c.h.b16 %v888
        %v979 = vunpack.c.l.b16 %v889
        %v980 = vunpack.c.h.b16 %v889
        %v981 = vunpack.c.l.b16 %v890
        %v982 = vunpack.c.h.b16 %v890
        %v983 = vunpack.c.l.b16 %v891
        %v984 = vunpack.c.h.b16 %v891
        %v985 = vunpack.c.l.b16 %v892
        %v986 = vunpack.c.h.b16 %v892
        %v987 = vunpack.c.l.b16 %v893
        %v988 = vunpack.c.h.b16 %v893
        %v989 = vunpack.c.l.b16 %v894
        %v990 = vunpack.c.h.b16 %v894
        %v991 = vunpack.c.l.b16 %v895
        %v992 = vunpack.c.h.b16 %v895
        %v993 = vunpack.c.l.b16 %v896
        %v994 = vunpack.c.h.b16 %v896
        %v995 = vunpack.c.l.b16 %v897
        %v996 = vunpack.c.h.b16 %v897
        %v997 = vunpack.c.l.b16 %v898
        %v998 = vunpack.c.h.b16 %v898
        %v999 = vunpack.c.l.b16 %v899
        %v1000 = vunpack.c.h.b16 %v899
        %v1001 = vunpack.c.l.b16 %v900
        %v1002 = vunpack.c.h.b16 %v900
        %v1003 = vunpack.c.l.b16 %v901
        %v1004 = vunpack.c.h.b16 %v901
        %v1005 = vunpack.c.l.b16 %v902
        %v1006 = vunpack.c.h.b16 %v902
        %v1007 = vunpack.c.l.b16 %v903
        %v1008 = vunpack.c.h.b16 %v903
        %v1009 = vunpack.c.l.b16 %v904
        %v1010 = vunpack.c.h.b16 %v904
        %v1011 = vunpack.c.l.b16 %v905
        %v1012 = vunpack.c.h.b16 %v905
        %v1013 = vunpack.c.l.b16 %v906
        %v1014 = vunpack.c.h.b16 %v906
        %v1015 = vunpack.c.l.b16 %v907
        %v1016 = vunpack.c.h.b16 %v907
        %v1017 = vpack.c.b16 %v955, %v953
        %v1018 = vpack.c.b16 %v956, %v954
        %v1019 = vpack.c.b16 %v959, %v957
        %v1020 = vpack.c.b16 %v960, %v958
        %v1021 = vpack.c.b16 %v963, %v961
        %v1022 = vpack.c.b16 %v964, %v962
        %v1023 = vpack.c.b16 %v967, %v965
        %v1024 = vpack.c.b16 %v968, %v966
        %v1025 = vpack.c.b16 %v971, %v969
        %v1026 = vpack.c.b16 %v972, %v970
        %v1027 = vpack.c.b16 %v975, %v973
        %v1028 = vpack.c.b16 %v976, %v974
        %v1029 = vpack.c.b16 %v979, %v977
        %v1030 = vpack.c.b16 %v980, %v978
        %v1031 = vpack.c.b16 %v983, %v981
        %v1032 = vpack.c.b16 %v984, %v982
        %v1033 = vpack.c.b16 %v987, %v985
        %v1034 = vpack.c.b16 %v988, %v986
        %v1035 = vpack.c.b16 %v991, %v989
        %v1036 = vpack.c.b16 %v992, %v990
        %v1037 = vpack.c.b16 %v995, %v993
        %v1038 = vpack.c.b16 %v996, %v994
        %v1039 = vpack.c.b16 %v999, %v997
        %v1040 = vpack.c.b16 %v1000, %v998
        %v1041 = vpack.c.b16 %v1003, %v1001
        %v1042 = vpack.c.b16 %v1004, %v1002
        %v1043 = vpack.c.b16 %v1007, %v1005
        %v1044 = vpack.c.b16 %v1008, %v1006
        %v1045 = vpack.c.b16 %v1011, %v1009
        %v1046 = vpack.c.b16 %v1012, %v1010
        %v1047 = vpack.c.b16 %v1015, %v1013
        %v1048 = vpack.c.b16 %v1016, %v1014
        %1081 = vmatprep.subr.bf16.mxu0 %v1032
        %1082 = vmatpush1.bf16.msra.mxu0 %v1031
        %1083 = vmatprep.subr.bf16.mxu0 %v1030
        %1084 = vmatpush1.bf16.msra.mxu0 %v1029
        %1085 = vmatprep.subr.bf16.mxu0 %v1028
        %1086 = vmatpush1.bf16.msra.mxu0 %v1027
        %1087 = vmatprep.subr.bf16.mxu0 %v1026
        %1088 = vmatpush1.bf16.msra.mxu0 %v1025
        %1089 = vmatprep.subr.bf16.mxu0 %v1024
        %1090 = vmatpush1.bf16.msra.mxu0 %v1023
        %1091 = vmatprep.subr.bf16.mxu0 %v1022
        %1092 = vmatpush1.bf16.msra.mxu0 %v1021
        %1093 = vmatprep.subr.bf16.mxu0 %v1020
        %1094 = vmatpush1.bf16.msra.mxu0 %v1019
        %1095 = vmatprep.subr.bf16.mxu0 %v1018
        %1096 = vmatpush1.bf16.msra.mxu0 %v1017
        %1097 = vmatprep.subr.bf16.mxu0 %v1048
        %1098 = vmatpush2.bf16.msra.mxu0 %v1047
        %1099 = vmatprep.subr.bf16.mxu0 %v1046
        %1100 = vmatpush2.bf16.msra.mxu0 %v1045
        %1101 = vmatprep.subr.bf16.mxu0 %v1044
        %1102 = vmatpush2.bf16.msra.mxu0 %v1043
        %1103 = vmatprep.subr.bf16.mxu0 %v1042
        %1104 = vmatpush2.bf16.msra.mxu0 %v1041
        %1105 = vmatprep.subr.bf16.mxu0 %v1040
        %1106 = vmatpush2.bf16.msra.mxu0 %v1039
        %1107 = vmatprep.subr.bf16.mxu0 %v1038
        %1108 = vmatpush2.bf16.msra.mxu0 %v1037
        %1109 = vmatprep.subr.bf16.mxu0 %v1036
        %1110 = vmatpush2.bf16.msra.mxu0 %v1035
        %1111 = vmatprep.subr.bf16.mxu0 %v1034
        %1112 = vmatpush2.bf16.msra.mxu0 %v1033
        %1113 = vmatprep.mubr.bf16.mxu0 %v874
        %1114 = vmatmul.mubr.bf16.gmra.mxu0 %v873
        %v1115 = vpop.f32.mrf.mxu0
        %v1116 = vadd.f32 %v914, %v1115
        %v1117 = vpop.f32.mrf.mxu0
        %v1118 = vadd.f32 %v918, %v1117
        %v1119 = vpop.f32.mrf.mxu0
        %v1120 = vpop.f32.mrf.mxu0
        %1121 = vdwg.mxu0
        %v1122 = vpack.c.bf16 %v1116, %v1116
        %v1123 = vpack.c.bf16 %v1118, %v1118
        %v1124 = vxor.u32 %v1122, 2147516416
        %v1125 = vxor.u32 %v1123, 2147516416
        %v1127 = vmul.bf16 %v1124, 1069105081
        %v1128 = vpow.bf16.pop %v1127
        %v1130 = vmul.bf16 %v1125, 1069105081
        %v1131 = vpow.bf16.pop %v1130
        %v1132 = vadd.bf16 %v1128, 1065369472
        %v1133 = vadd.bf16 %v1131, 1065369472
        %v1134 = vrcp.bf16.pop %v1132
        %v1135 = vmul.bf16 1065369472, %v1134
        %v1136 = vrcp.bf16.pop %v1133
        %v1137 = vmul.bf16 1065369472, %v1136
        %v1138 = vmul.bf16 %v1135, %v1122
        %v1139 = vmul.bf16 %v1137, %v1123
        %v1140 = vld [vmem:[#allocation4] sm:$0xff]
        %v1141 = vld [vmem:[#allocation4 + $0x8] sm:$0xff]
        %v1142 = vld [vmem:[#allocation4 + $0x10] sm:$0xff]
        %v1143 = vld [vmem:[#allocation4 + $0x18] sm:$0xff]
        %v1144 = vld [vmem:[#allocation4 + $0x20] sm:$0xff]
        %v1145 = vld [vmem:[#allocation4 + $0x28] sm:$0xff]
        %v1146 = vld [vmem:[#allocation4 + $0x30] sm:$0xff]
        %v1147 = vld [vmem:[#allocation4 + $0x38] sm:$0xff]
        %v1148 = vld [vmem:[#allocation4 + $0x40] sm:$0xff]
        %v1149 = vld [vmem:[#allocation4 + $0x48] sm:$0xff]
        %v1150 = vld [vmem:[#allocation4 + $0x50] sm:$0xff]
        %v1151 = vld [vmem:[#allocation4 + $0x58] sm:$0xff]
        %v1152 = vld [vmem:[#allocation4 + $0x60] sm:$0xff]
        %v1153 = vld [vmem:[#allocation4 + $0x68] sm:$0xff]
        %v1154 = vld [vmem:[#allocation4 + $0x70] sm:$0xff]
        %v1155 = vld [vmem:[#allocation4 + $0x78] sm:$0xff]
        %v1156 = vld [vmem:[#allocation4 + $0x80] sm:$0xff]
        %v1157 = vld [vmem:[#allocation4 + $0x88] sm:$0xff]
        %v1158 = vld [vmem:[#allocation4 + $0x90] sm:$0xff]
        %v1159 = vld [vmem:[#allocation4 + $0x98] sm:$0xff]
        %v1160 = vld [vmem:[#allocation4 + $0xa0] sm:$0xff]
        %v1161 = vld [vmem:[#allocation4 + $0xa8] sm:$0xff]
        %v1162 = vld [vmem:[#allocation4 + $0xb0] sm:$0xff]
        %v1163 = vld [vmem:[#allocation4 + $0xb8] sm:$0xff]
        %v1164 = vld [vmem:[#allocation4 + $0xc0] sm:$0xff]
        %v1165 = vld [vmem:[#allocation4 + $0xc8] sm:$0xff]
        %v1166 = vld [vmem:[#allocation4 + $0xd0] sm:$0xff]
        %v1167 = vld [vmem:[#allocation4 + $0xd8] sm:$0xff]
        %v1168 = vld [vmem:[#allocation4 + $0xe0] sm:$0xff]
        %v1169 = vld [vmem:[#allocation4 + $0xe8] sm:$0xff]
        %v1170 = vld [vmem:[#allocation4 + $0xf0] sm:$0xff]
        %v1171 = vld [vmem:[#allocation4 + $0xf8] sm:$0xff]
        %v1172 = vld [vmem:[#allocation4 + $0x100] sm:$0xff]
        %v1173 = vld [vmem:[#allocation4 + $0x108] sm:$0xff]
        %v1174 = vld [vmem:[#allocation4 + $0x110] sm:$0xff]
        %v1175 = vld [vmem:[#allocation4 + $0x118] sm:$0xff]
        %v1176 = vld [vmem:[#allocation4 + $0x120] sm:$0xff]
        %v1177 = vld [vmem:[#allocation4 + $0x128] sm:$0xff]
        %v1178 = vld [vmem:[#allocation4 + $0x130] sm:$0xff]
        %v1179 = vld [vmem:[#allocation4 + $0x138] sm:$0xff]
        %v1180 = vld [vmem:[#allocation4 + $0x140] sm:$0xff]
        %v1181 = vld [vmem:[#allocation4 + $0x148] sm:$0xff]
        %v1182 = vld [vmem:[#allocation4 + $0x150] sm:$0xff]
        %v1183 = vld [vmem:[#allocation4 + $0x158] sm:$0xff]
        %v1184 = vld [vmem:[#allocation4 + $0x160] sm:$0xff]
        %v1185 = vld [vmem:[#allocation4 + $0x168] sm:$0xff]
        %v1186 = vld [vmem:[#allocation4 + $0x170] sm:$0xff]
        %v1187 = vld [vmem:[#allocation4 + $0x178] sm:$0xff]
        %v1188 = vld [vmem:[#allocation4 + $0x180] sm:$0xff]
        %v1189 = vld [vmem:[#allocation4 + $0x188] sm:$0xff]
        %v1190 = vld [vmem:[#allocation4 + $0x190] sm:$0xff]
        %v1191 = vld [vmem:[#allocation4 + $0x198] sm:$0xff]
        %v1192 = vld [vmem:[#allocation4 + $0x1a0] sm:$0xff]
        %v1193 = vld [vmem:[#allocation4 + $0x1a8] sm:$0xff]
        %v1194 = vld [vmem:[#allocation4 + $0x1b0] sm:$0xff]
        %v1195 = vld [vmem:[#allocation4 + $0x1b8] sm:$0xff]
        %v1196 = vld [vmem:[#allocation4 + $0x1c0] sm:$0xff]
        %v1197 = vld [vmem:[#allocation4 + $0x1c8] sm:$0xff]
        %v1198 = vld [vmem:[#allocation4 + $0x1d0] sm:$0xff]
        %v1199 = vld [vmem:[#allocation4 + $0x1d8] sm:$0xff]
        %v1200 = vld [vmem:[#allocation4 + $0x1e0] sm:$0xff]
        %v1201 = vld [vmem:[#allocation4 + $0x1e8] sm:$0xff]
        %v1202 = vld [vmem:[#allocation4 + $0x1f0] sm:$0xff]
        %v1203 = vld [vmem:[#allocation4 + $0x1f8] sm:$0xff]
        %v1204 = vld [vmem:[%s6] sm:$0xf]
        %v1206 = vlaneseq
        %v1207 = vshrl.u32 %v1206, 7
        %v1208 = vsub.s32 0, %v1207
        %v1209 = vrot.slane %v1204, %v1208
        %v1210 = vlaneseq
        %v1211 = vshrl.u32 %v1210, 7
        %v1212 = vsub.s32 1, %v1211
        %v1213 = vrot.slane %v1204, %v1212
        %v1214 = vlaneseq
        %v1215 = vshrl.u32 %v1214, 7
        %v1216 = vsub.s32 2, %v1215
        %v1217 = vrot.slane %v1204, %v1216
        %v1218 = vlaneseq
        %v1219 = vshrl.u32 %v1218, 7
        %v1220 = vsub.s32 3, %v1219
        %v1221 = vrot.slane %v1204, %v1220
        %v1290 = vunpack.c.l.b16 %v1140
        %v1291 = vunpack.c.h.b16 %v1140
        %v1292 = vunpack.c.l.b16 %v1141
        %v1293 = vunpack.c.h.b16 %v1141
        %v1294 = vunpack.c.l.b16 %v1142
        %v1295 = vunpack.c.h.b16 %v1142
        %v1296 = vunpack.c.l.b16 %v1143
        %v1297 = vunpack.c.h.b16 %v1143
        %v1298 = vunpack.c.l.b16 %v1144
        %v1299 = vunpack.c.h.b16 %v1144
        %v1300 = vunpack.c.l.b16 %v1145
        %v1301 = vunpack.c.h.b16 %v1145
        %v1302 = vunpack.c.l.b16 %v1146
        %v1303 = vunpack.c.h.b16 %v1146
        %v1304 = vunpack.c.l.b16 %v1147
        %v1305 = vunpack.c.h.b16 %v1147
        %v1306 = vunpack.c.l.b16 %v1148
        %v1307 = vunpack.c.h.b16 %v1148
        %v1308 = vunpack.c.l.b16 %v1149
        %v1309 = vunpack.c.h.b16 %v1149
        %v1310 = vunpack.c.l.b16 %v1150
        %v1311 = vunpack.c.h.b16 %v1150
        %v1312 = vunpack.c.l.b16 %v1151
        %v1313 = vunpack.c.h.b16 %v1151
        %v1314 = vunpack.c.l.b16 %v1152
        %v1315 = vunpack.c.h.b16 %v1152
        %v1316 = vunpack.c.l.b16 %v1153
        %v1317 = vunpack.c.h.b16 %v1153
        %v1318 = vunpack.c.l.b16 %v1154
        %v1319 = vunpack.c.h.b16 %v1154
        %v1320 = vunpack.c.l.b16 %v1155
        %v1321 = vunpack.c.h.b16 %v1155
        %v1322 = vunpack.c.l.b16 %v1156
        %v1323 = vunpack.c.h.b16 %v1156
        %v1324 = vunpack.c.l.b16 %v1157
        %v1325 = vunpack.c.h.b16 %v1157
        %v1326 = vunpack.c.l.b16 %v1158
        %v1327 = vunpack.c.h.b16 %v1158
        %v1328 = vunpack.c.l.b16 %v1159
        %v1329 = vunpack.c.h.b16 %v1159
        %v1330 = vunpack.c.l.b16 %v1160
        %v1331 = vunpack.c.h.b16 %v1160
        %v1332 = vunpack.c.l.b16 %v1161
        %v1333 = vunpack.c.h.b16 %v1161
        %v1334 = vunpack.c.l.b16 %v1162
        %v1335 = vunpack.c.h.b16 %v1162
        %v1336 = vunpack.c.l.b16 %v1163
        %v1337 = vunpack.c.h.b16 %v1163
        %v1338 = vunpack.c.l.b16 %v1164
        %v1339 = vunpack.c.h.b16 %v1164
        %v1340 = vunpack.c.l.b16 %v1165
        %v1341 = vunpack.c.h.b16 %v1165
        %v1342 = vunpack.c.l.b16 %v1166
        %v1343 = vunpack.c.h.b16 %v1166
        %v1344 = vunpack.c.l.b16 %v1167
        %v1345 = vunpack.c.h.b16 %v1167
        %v1346 = vunpack.c.l.b16 %v1168
        %v1347 = vunpack.c.h.b16 %v1168
        %v1348 = vunpack.c.l.b16 %v1169
        %v1349 = vunpack.c.h.b16 %v1169
        %v1350 = vunpack.c.l.b16 %v1170
        %v1351 = vunpack.c.h.b16 %v1170
        %v1352 = vunpack.c.l.b16 %v1171
        %v1353 = vunpack.c.h.b16 %v1171
        %v1354 = vunpack.c.l.b16 %v1172
        %v1355 = vunpack.c.h.b16 %v1172
        %v1356 = vunpack.c.l.b16 %v1173
        %v1357 = vunpack.c.h.b16 %v1173
        %v1358 = vunpack.c.l.b16 %v1174
        %v1359 = vunpack.c.h.b16 %v1174
        %v1360 = vunpack.c.l.b16 %v1175
        %v1361 = vunpack.c.h.b16 %v1175
        %v1362 = vunpack.c.l.b16 %v1176
        %v1363 = vunpack.c.h.b16 %v1176
        %v1364 = vunpack.c.l.b16 %v1177
        %v1365 = vunpack.c.h.b16 %v1177
        %v1366 = vunpack.c.l.b16 %v1178
        %v1367 = vunpack.c.h.b16 %v1178
        %v1368 = vunpack.c.l.b16 %v1179
        %v1369 = vunpack.c.h.b16 %v1179
        %v1370 = vunpack.c.l.b16 %v1180
        %v1371 = vunpack.c.h.b16 %v1180
        %v1372 = vunpack.c.l.b16 %v1181
        %v1373 = vunpack.c.h.b16 %v1181
        %v1374 = vunpack.c.l.b16 %v1182
        %v1375 = vunpack.c.h.b16 %v1182
        %v1376 = vunpack.c.l.b16 %v1183
        %v1377 = vunpack.c.h.b16 %v1183
        %v1378 = vunpack.c.l.b16 %v1184
        %v1379 = vunpack.c.h.b16 %v1184
        %v1380 = vunpack.c.l.b16 %v1185
        %v1381 = vunpack.c.h.b16 %v1185
        %v1382 = vunpack.c.l.b16 %v1186
        %v1383 = vunpack.c.h.b16 %v1186
        %v1384 = vunpack.c.l.b16 %v1187
        %v1385 = vunpack.c.h.b16 %v1187
        %v1386 = vunpack.c.l.b16 %v1188
        %v1387 = vunpack.c.h.b16 %v1188
        %v1388 = vunpack.c.l.b16 %v1189
        %v1389 = vunpack.c.h.b16 %v1189
        %v1390 = vunpack.c.l.b16 %v1190
        %v1391 = vunpack.c.h.b16 %v1190
        %v1392 = vunpack.c.l.b16 %v1191
        %v1393 = vunpack.c.h.b16 %v1191
        %v1394 = vunpack.c.l.b16 %v1192
        %v1395 = vunpack.c.h.b16 %v1192
        %v1396 = vunpack.c.l.b16 %v1193
        %v1397 = vunpack.c.h.b16 %v1193
        %v1398 = vunpack.c.l.b16 %v1194
        %v1399 = vunpack.c.h.b16 %v1194
        %v1400 = vunpack.c.l.b16 %v1195
        %v1401 = vunpack.c.h.b16 %v1195
        %v1402 = vunpack.c.l.b16 %v1196
        %v1403 = vunpack.c.h.b16 %v1196
        %v1404 = vunpack.c.l.b16 %v1197
        %v1405 = vunpack.c.h.b16 %v1197
        %v1406 = vunpack.c.l.b16 %v1198
        %v1407 = vunpack.c.h.b16 %v1198
        %v1408 = vunpack.c.l.b16 %v1199
        %v1409 = vunpack.c.h.b16 %v1199
        %v1410 = vunpack.c.l.b16 %v1200
        %v1411 = vunpack.c.h.b16 %v1200
        %v1412 = vunpack.c.l.b16 %v1201
        %v1413 = vunpack.c.h.b16 %v1201
        %v1414 = vunpack.c.l.b16 %v1202
        %v1415 = vunpack.c.h.b16 %v1202
        %v1416 = vunpack.c.l.b16 %v1203
        %v1417 = vunpack.c.h.b16 %v1203
        %v1418 = vpack.c.b16 %v1294, %v1290
        %v1419 = vpack.c.b16 %v1295, %v1291
        %v1420 = vpack.c.b16 %v1296, %v1292
        %v1421 = vpack.c.b16 %v1297, %v1293
        %v1422 = vpack.c.b16 %v1302, %v1298
        %v1423 = vpack.c.b16 %v1303, %v1299
        %v1424 = vpack.c.b16 %v1304, %v1300
        %v1425 = vpack.c.b16 %v1305, %v1301
        %v1426 = vpack.c.b16 %v1310, %v1306
        %v1427 = vpack.c.b16 %v1311, %v1307
        %v1428 = vpack.c.b16 %v1312, %v1308
        %v1429 = vpack.c.b16 %v1313, %v1309
        %v1430 = vpack.c.b16 %v1318, %v1314
        %v1431 = vpack.c.b16 %v1319, %v1315
        %v1432 = vpack.c.b16 %v1320, %v1316
        %v1433 = vpack.c.b16 %v1321, %v1317
        %v1434 = vpack.c.b16 %v1326, %v1322
        %v1435 = vpack.c.b16 %v1327, %v1323
        %v1436 = vpack.c.b16 %v1328, %v1324
        %v1437 = vpack.c.b16 %v1329, %v1325
        %v1438 = vpack.c.b16 %v1334, %v1330
        %v1439 = vpack.c.b16 %v1335, %v1331
        %v1440 = vpack.c.b16 %v1336, %v1332
        %v1441 = vpack.c.b16 %v1337, %v1333
        %v1442 = vpack.c.b16 %v1342, %v1338
        %v1443 = vpack.c.b16 %v1343, %v1339
        %v1444 = vpack.c.b16 %v1344, %v1340
        %v1445 = vpack.c.b16 %v1345, %v1341
        %v1446 = vpack.c.b16 %v1350, %v1346
        %v1447 = vpack.c.b16 %v1351, %v1347
        %v1448 = vpack.c.b16 %v1352, %v1348
        %v1449 = vpack.c.b16 %v1353, %v1349
        %v1450 = vpack.c.b16 %v1358, %v1354
        %v1451 = vpack.c.b16 %v1359, %v1355
        %v1452 = vpack.c.b16 %v1360, %v1356
        %v1453 = vpack.c.b16 %v1361, %v1357
        %v1454 = vpack.c.b16 %v1366, %v1362
        %v1455 = vpack.c.b16 %v1367, %v1363
        %v1456 = vpack.c.b16 %v1368, %v1364
        %v1457 = vpack.c.b16 %v1369, %v1365
        %v1458 = vpack.c.b16 %v1374, %v1370
        %v1459 = vpack.c.b16 %v1375, %v1371
        %v1460 = vpack.c.b16 %v1376, %v1372
        %v1461 = vpack.c.b16 %v1377, %v1373
        %v1462 = vpack.c.b16 %v1382, %v1378
        %v1463 = vpack.c.b16 %v1383, %v1379
        %v1464 = vpack.c.b16 %v1384, %v1380
        %v1465 = vpack.c.b16 %v1385, %v1381
        %v1466 = vpack.c.b16 %v1390, %v1386
        %v1467 = vpack.c.b16 %v1391, %v1387
        %v1468 = vpack.c.b16 %v1392, %v1388
        %v1469 = vpack.c.b16 %v1393, %v1389
        %v1470 = vpack.c.b16 %v1398, %v1394
        %v1471 = vpack.c.b16 %v1399, %v1395
        %v1472 = vpack.c.b16 %v1400, %v1396
        %v1473 = vpack.c.b16 %v1401, %v1397
        %v1474 = vpack.c.b16 %v1406, %v1402
        %v1475 = vpack.c.b16 %v1407, %v1403
        %v1476 = vpack.c.b16 %v1408, %v1404
        %v1477 = vpack.c.b16 %v1409, %v1405
        %v1478 = vpack.c.b16 %v1414, %v1410
        %v1479 = vpack.c.b16 %v1415, %v1411
        %v1480 = vpack.c.b16 %v1416, %v1412
        %v1481 = vpack.c.b16 %v1417, %v1413
        %1546 = vmatprep.subr.bf16.mxu0 %v1447
        %1547 = vmatpush1.bf16.msra.mxu0 %v1446
        %1548 = vmatprep.subr.bf16.mxu0 %v1443
        %1549 = vmatpush1.bf16.msra.mxu0 %v1442
        %1550 = vmatprep.subr.bf16.mxu0 %v1439
        %1551 = vmatpush1.bf16.msra.mxu0 %v1438
        %1552 = vmatprep.subr.bf16.mxu0 %v1435
        %1553 = vmatpush1.bf16.msra.mxu0 %v1434
        %1554 = vmatprep.subr.bf16.mxu0 %v1431
        %1555 = vmatpush1.bf16.msra.mxu0 %v1430
        %1556 = vmatprep.subr.bf16.mxu0 %v1427
        %1557 = vmatpush1.bf16.msra.mxu0 %v1426
        %1558 = vmatprep.subr.bf16.mxu0 %v1423
        %1559 = vmatpush1.bf16.msra.mxu0 %v1422
        %1560 = vmatprep.subr.bf16.mxu0 %v1419
        %1561 = vmatpush1.bf16.msra.mxu0 %v1418
        %1562 = vmatprep.subr.bf16.mxu0 %v1479
        %1563 = vmatpush2.bf16.msra.mxu0 %v1478
        %1564 = vmatprep.subr.bf16.mxu0 %v1475
        %1565 = vmatpush2.bf16.msra.mxu0 %v1474
        %1566 = vmatprep.subr.bf16.mxu0 %v1471
        %1567 = vmatpush2.bf16.msra.mxu0 %v1470
        %1568 = vmatprep.subr.bf16.mxu0 %v1467
        %1569 = vmatpush2.bf16.msra.mxu0 %v1466
        %1570 = vmatprep.subr.bf16.mxu0 %v1463
        %1571 = vmatpush2.bf16.msra.mxu0 %v1462
        %1572 = vmatprep.subr.bf16.mxu0 %v1459
        %1573 = vmatpush2.bf16.msra.mxu0 %v1458
        %1574 = vmatprep.subr.bf16.mxu0 %v1455
        %1575 = vmatpush2.bf16.msra.mxu0 %v1454
        %1576 = vmatprep.subr.bf16.mxu0 %v1451
        %1577 = vmatpush2.bf16.msra.mxu0 %v1450
        %1578 = vmatprep.mubr.bf16.mxu0 %v1139
        %1579 = vmatmul.mubr.bf16.gmra.mxu0 %v1138
        %v1580 = vpop.f32.mrf.mxu0
        %v1581 = vadd.f32 %v1209, %v1580
        %v1582 = vpop.f32.mrf.mxu0
        %v1583 = vadd.f32 %v1213, %v1582
        %v1584 = vpop.f32.mrf.mxu0
        %v1585 = vpop.f32.mrf.mxu0
        %1586 = vdwg.mxu0
        %1587 = vmatprep.subr.bf16.mxu0 %v1449
        %1588 = vmatpush1.bf16.msra.mxu0 %v1448
        %1589 = vmatprep.subr.bf16.mxu0 %v1445
        %1590 = vmatpush1.bf16.msra.mxu0 %v1444
        %1591 = vmatprep.subr.bf16.mxu0 %v1441
        %1592 = vmatpush1.bf16.msra.mxu0 %v1440
        %1593 = vmatprep.subr.bf16.mxu0 %v1437
        %1594 = vmatpush1.bf16.msra.mxu0 %v1436
        %1595 = vmatprep.subr.bf16.mxu0 %v1433
        %1596 = vmatpush1.bf16.msra.mxu0 %v1432
        %1597 = vmatprep.subr.bf16.mxu0 %v1429
        %1598 = vmatpush1.bf16.msra.mxu0 %v1428
        %1599 = vmatprep.subr.bf16.mxu0 %v1425
        %1600 = vmatpush1.bf16.msra.mxu0 %v1424
        %1601 = vmatprep.subr.bf16.mxu0 %v1421
        %1602 = vmatpush1.bf16.msra.mxu0 %v1420
        %1603 = vmatprep.subr.bf16.mxu0 %v1481
        %1604 = vmatpush2.bf16.msra.mxu0 %v1480
        %1605 = vmatprep.subr.bf16.mxu0 %v1477
        %1606 = vmatpush2.bf16.msra.mxu0 %v1476
        %1607 = vmatprep.subr.bf16.mxu0 %v1473
        %1608 = vmatpush2.bf16.msra.mxu0 %v1472
        %1609 = vmatprep.subr.bf16.mxu0 %v1469
        %1610 = vmatpush2.bf16.msra.mxu0 %v1468
        %1611 = vmatprep.subr.bf16.mxu0 %v1465
        %1612 = vmatpush2.bf16.msra.mxu0 %v1464
        %1613 = vmatprep.subr.bf16.mxu0 %v1461
        %1614 = vmatpush2.bf16.msra.mxu0 %v1460
        %1615 = vmatprep.subr.bf16.mxu0 %v1457
        %1616 = vmatpush2.bf16.msra.mxu0 %v1456
        %1617 = vmatprep.subr.bf16.mxu0 %v1453
        %1618 = vmatpush2.bf16.msra.mxu0 %v1452
        %1619 = vmatprep.mubr.bf16.mxu0 %v1139
        %1620 = vmatmul.mubr.bf16.gmra.mxu0 %v1138
        %v1621 = vpop.f32.mrf.mxu0
        %v1622 = vadd.f32 %v1217, %v1621
        %v1623 = vpop.f32.mrf.mxu0
        %v1624 = vadd.f32 %v1221, %v1623
        %v1625 = vpop.f32.mrf.mxu0
        %v1626 = vpop.f32.mrf.mxu0
        %1627 = vdwg.mxu0
        %v1628 = vpack.c.bf16 %v1581, %v1581
        %v1629 = vpack.c.bf16 %v1583, %v1583
        %v1630 = vxor.u32 %v1628, 2147516416
        %v1631 = vxor.u32 %v1629, 2147516416
        %v1633 = vmul.bf16 %v1630, 1069105081
        %v1634 = vpow.bf16.pop %v1633
        %v1636 = vmul.bf16 %v1631, 1069105081
        %v1637 = vpow.bf16.pop %v1636
        %v1638 = vadd.bf16 %v1634, 1065369472
        %v1639 = vadd.bf16 %v1637, 1065369472
        %v1640 = vrcp.bf16.pop %v1638
        %v1641 = vmul.bf16 1065369472, %v1640
        %v1642 = vrcp.bf16.pop %v1639
        %v1643 = vmul.bf16 1065369472, %v1642
        %v1644 = vmul.bf16 %v1641, %v1628
        %v1645 = vmul.bf16 %v1643, %v1629
        %v1646 = vld [vmem:[#allocation6] sm:$0xff]
        %v1647 = vld [vmem:[#allocation6 + $0x8] sm:$0xff]
        %v1648 = vld [vmem:[#allocation6 + $0x10] sm:$0xff]
        %v1649 = vld [vmem:[#allocation6 + $0x18] sm:$0xff]
        %v1650 = vld [vmem:[#allocation6 + $0x20] sm:$0xff]
        %v1651 = vld [vmem:[#allocation6 + $0x28] sm:$0xff]
        %v1652 = vld [vmem:[#allocation6 + $0x30] sm:$0xff]
        %v1653 = vld [vmem:[#allocation6 + $0x38] sm:$0xff]
        %v1654 = vld [vmem:[#allocation6 + $0x40] sm:$0xff]
        %v1655 = vld [vmem:[#allocation6 + $0x48] sm:$0xff]
        %v1656 = vld [vmem:[#allocation6 + $0x50] sm:$0xff]
        %v1657 = vld [vmem:[#allocation6 + $0x58] sm:$0xff]
        %v1658 = vld [vmem:[#allocation6 + $0x60] sm:$0xff]
        %v1659 = vld [vmem:[#allocation6 + $0x68] sm:$0xff]
        %v1660 = vld [vmem:[#allocation6 + $0x70] sm:$0xff]
        %v1661 = vld [vmem:[#allocation6 + $0x78] sm:$0xff]
        %v1662 = vld [vmem:[#allocation6 + $0x80] sm:$0xff]
        %v1663 = vld [vmem:[#allocation6 + $0x88] sm:$0xff]
        %v1664 = vld [vmem:[#allocation6 + $0x90] sm:$0xff]
        %v1665 = vld [vmem:[#allocation6 + $0x98] sm:$0xff]
        %v1666 = vld [vmem:[#allocation6 + $0xa0] sm:$0xff]
        %v1667 = vld [vmem:[#allocation6 + $0xa8] sm:$0xff]
        %v1668 = vld [vmem:[#allocation6 + $0xb0] sm:$0xff]
        %v1669 = vld [vmem:[#allocation6 + $0xb8] sm:$0xff]
        %v1670 = vld [vmem:[#allocation6 + $0xc0] sm:$0xff]
        %v1671 = vld [vmem:[#allocation6 + $0xc8] sm:$0xff]
        %v1672 = vld [vmem:[#allocation6 + $0xd0] sm:$0xff]
        %v1673 = vld [vmem:[#allocation6 + $0xd8] sm:$0xff]
        %v1674 = vld [vmem:[#allocation6 + $0xe0] sm:$0xff]
        %v1675 = vld [vmem:[#allocation6 + $0xe8] sm:$0xff]
        %v1676 = vld [vmem:[#allocation6 + $0xf0] sm:$0xff]
        %v1677 = vld [vmem:[#allocation6 + $0xf8] sm:$0xff]
        %v1678 = vld [vmem:[%s8] sm:$0x3]
        %v1680 = vlaneseq
        %v1681 = vshrl.u32 %v1680, 7
        %v1682 = vsub.s32 0, %v1681
        %v1683 = vrot.slane %v1678, %v1682
        %v1684 = vlaneseq
        %v1685 = vshrl.u32 %v1684, 7
        %v1686 = vsub.s32 1, %v1685
        %v1687 = vrot.slane %v1678, %v1686
        %v1722 = vunpack.c.l.b16 %v1646
        %v1723 = vunpack.c.h.b16 %v1646
        %v1724 = vunpack.c.l.b16 %v1647
        %v1725 = vunpack.c.h.b16 %v1647
        %v1726 = vunpack.c.l.b16 %v1648
        %v1727 = vunpack.c.h.b16 %v1648
        %v1728 = vunpack.c.l.b16 %v1649
        %v1729 = vunpack.c.h.b16 %v1649
        %v1730 = vunpack.c.l.b16 %v1650
        %v1731 = vunpack.c.h.b16 %v1650
        %v1732 = vunpack.c.l.b16 %v1651
        %v1733 = vunpack.c.h.b16 %v1651
        %v1734 = vunpack.c.l.b16 %v1652
        %v1735 = vunpack.c.h.b16 %v1652
        %v1736 = vunpack.c.l.b16 %v1653
        %v1737 = vunpack.c.h.b16 %v1653
        %v1738 = vunpack.c.l.b16 %v1654
        %v1739 = vunpack.c.h.b16 %v1654
        %v1740 = vunpack.c.l.b16 %v1655
        %v1741 = vunpack.c.h.b16 %v1655
        %v1742 = vunpack.c.l.b16 %v1656
        %v1743 = vunpack.c.h.b16 %v1656
        %v1744 = vunpack.c.l.b16 %v1657
        %v1745 = vunpack.c.h.b16 %v1657
        %v1746 = vunpack.c.l.b16 %v1658
        %v1747 = vunpack.c.h.b16 %v1658
        %v1748 = vunpack.c.l.b16 %v1659
        %v1749 = vunpack.c.h.b16 %v1659
        %v1750 = vunpack.c.l.b16 %v1660
        %v1751 = vunpack.c.h.b16 %v1660
        %v1752 = vunpack.c.l.b16 %v1661
        %v1753 = vunpack.c.h.b16 %v1661
        %v1754 = vunpack.c.l.b16 %v1662
        %v1755 = vunpack.c.h.b16 %v1662
        %v1756 = vunpack.c.l.b16 %v1663
        %v1757 = vunpack.c.h.b16 %v1663
        %v1758 = vunpack.c.l.b16 %v1664
        %v1759 = vunpack.c.h.b16 %v1664
        %v1760 = vunpack.c.l.b16 %v1665
        %v1761 = vunpack.c.h.b16 %v1665
        %v1762 = vunpack.c.l.b16 %v1666
        %v1763 = vunpack.c.h.b16 %v1666
        %v1764 = vunpack.c.l.b16 %v1667
        %v1765 = vunpack.c.h.b16 %v1667
        %v1766 = vunpack.c.l.b16 %v1668
        %v1767 = vunpack.c.h.b16 %v1668
        %v1768 = vunpack.c.l.b16 %v1669
        %v1769 = vunpack.c.h.b16 %v1669
        %v1770 = vunpack.c.l.b16 %v1670
        %v1771 = vunpack.c.h.b16 %v1670
        %v1772 = vunpack.c.l.b16 %v1671
        %v1773 = vunpack.c.h.b16 %v1671
        %v1774 = vunpack.c.l.b16 %v1672
        %v1775 = vunpack.c.h.b16 %v1672
        %v1776 = vunpack.c.l.b16 %v1673
        %v1777 = vunpack.c.h.b16 %v1673
        %v1778 = vunpack.c.l.b16 %v1674
        %v1779 = vunpack.c.h.b16 %v1674
        %v1780 = vunpack.c.l.b16 %v1675
        %v1781 = vunpack.c.h.b16 %v1675
        %v1782 = vunpack.c.l.b16 %v1676
        %v1783 = vunpack.c.h.b16 %v1676
        %v1784 = vunpack.c.l.b16 %v1677
        %v1785 = vunpack.c.h.b16 %v1677
        %v1786 = vpack.c.b16 %v1724, %v1722
        %v1787 = vpack.c.b16 %v1725, %v1723
        %v1788 = vpack.c.b16 %v1728, %v1726
        %v1789 = vpack.c.b16 %v1729, %v1727
        %v1790 = vpack.c.b16 %v1732, %v1730
        %v1791 = vpack.c.b16 %v1733, %v1731
        %v1792 = vpack.c.b16 %v1736, %v1734
        %v1793 = vpack.c.b16 %v1737, %v1735
        %v1794 = vpack.c.b16 %v1740, %v1738
        %v1795 = vpack.c.b16 %v1741, %v1739
        %v1796 = vpack.c.b16 %v1744, %v1742
        %v1797 = vpack.c.b16 %v1745, %v1743
        %v1798 = vpack.c.b16 %v1748, %v1746
        %v1799 = vpack.c.b16 %v1749, %v1747
        %v1800 = vpack.c.b16 %v1752, %v1750
        %v1801 = vpack.c.b16 %v1753, %v1751
        %v1802 = vpack.c.b16 %v1756, %v1754
        %v1803 = vpack.c.b16 %v1757, %v1755
        %v1804 = vpack.c.b16 %v1760, %v1758
        %v1805 = vpack.c.b16 %v1761, %v1759
        %v1806 = vpack.c.b16 %v1764, %v1762
        %v1807 = vpack.c.b16 %v1765, %v1763
        %v1808 = vpack.c.b16 %v1768, %v1766
        %v1809 = vpack.c.b16 %v1769, %v1767
        %v1810 = vpack.c.b16 %v1772, %v1770
        %v1811 = vpack.c.b16 %v1773, %v1771
        %v1812 = vpack.c.b16 %v1776, %v1774
        %v1813 = vpack.c.b16 %v1777, %v1775
        %v1814 = vpack.c.b16 %v1780, %v1778
        %v1815 = vpack.c.b16 %v1781, %v1779
        %v1816 = vpack.c.b16 %v1784, %v1782
        %v1817 = vpack.c.b16 %v1785, %v1783
        %1850 = vmatprep.subr.bf16.mxu0 %v1801
        %1851 = vmatpush1.bf16.msra.mxu0 %v1800
        %1852 = vmatprep.subr.bf16.mxu0 %v1799
        %1853 = vmatpush1.bf16.msra.mxu0 %v1798
        %1854 = vmatprep.subr.bf16.mxu0 %v1797
        %1855 = vmatpush1.bf16.msra.mxu0 %v1796
        %1856 = vmatprep.subr.bf16.mxu0 %v1795
        %1857 = vmatpush1.bf16.msra.mxu0 %v1794
        %1858 = vmatprep.subr.bf16.mxu0 %v1793
        %1859 = vmatpush1.bf16.msra.mxu0 %v1792
        %1860 = vmatprep.subr.bf16.mxu0 %v1791
        %1861 = vmatpush1.bf16.msra.mxu0 %v1790
        %1862 = vmatprep.subr.bf16.mxu0 %v1789
        %1863 = vmatpush1.bf16.msra.mxu0 %v1788
        %1864 = vmatprep.subr.bf16.mxu0 %v1787
        %1865 = vmatpush1.bf16.msra.mxu0 %v1786
        %1866 = vmatprep.subr.bf16.mxu0 %v1817
        %1867 = vmatpush2.bf16.msra.mxu0 %v1816
        %1868 = vmatprep.subr.bf16.mxu0 %v1815
        %1869 = vmatpush2.bf16.msra.mxu0 %v1814
        %1870 = vmatprep.subr.bf16.mxu0 %v1813
        %1871 = vmatpush2.bf16.msra.mxu0 %v1812
        %1872 = vmatprep.subr.bf16.mxu0 %v1811
        %1873 = vmatpush2.bf16.msra.mxu0 %v1810
        %1874 = vmatprep.subr.bf16.mxu0 %v1809
        %1875 = vmatpush2.bf16.msra.mxu0 %v1808
        %1876 = vmatprep.subr.bf16.mxu0 %v1807
        %1877 = vmatpush2.bf16.msra.mxu0 %v1806
        %1878 = vmatprep.subr.bf16.mxu0 %v1805
        %1879 = vmatpush2.bf16.msra.mxu0 %v1804
        %1880 = vmatprep.subr.bf16.mxu0 %v1803
        %1881 = vmatpush2.bf16.msra.mxu0 %v1802
        %1882 = vmatprep.mubr.bf16.mxu0 %v1645
        %1883 = vmatmul.mubr.bf16.gmra.mxu0 %v1644
        %v1884 = vpop.f32.mrf.mxu0
        %v1885 = vadd.f32 %v1683, %v1884
        %v1886 = vpop.f32.mrf.mxu0
        %v1887 = vadd.f32 %v1687, %v1886
        %v1888 = vpop.f32.mrf.mxu0
        %v1889 = vpop.f32.mrf.mxu0
        %1890 = vdwg.mxu0
        %v1891 = vpack.c.bf16 %v1622, %v1622
        %v1892 = vpack.c.bf16 %v1624, %v1624
        %v1893 = vxor.u32 %v1891, 2147516416
        %v1894 = vxor.u32 %v1892, 2147516416
        %v1896 = vmul.bf16 %v1893, 1069105081
        %v1897 = vpow.bf16.pop %v1896
        %v1899 = vmul.bf16 %v1894, 1069105081
        %v1900 = vpow.bf16.pop %v1899
        %v1901 = vadd.bf16 %v1897, 1065369472
        %v1902 = vadd.bf16 %v1900, 1065369472
        %v1903 = vrcp.bf16.pop %v1901
        %v1904 = vmul.bf16 1065369472, %v1903
        %v1905 = vrcp.bf16.pop %v1902
        %v1906 = vmul.bf16 1065369472, %v1905
        %v1907 = vmul.bf16 %v1904, %v1891
        %v1908 = vmul.bf16 %v1906, %v1892
        %v1909 = vld [vmem:[#allocation7] sm:$0xff]
        %v1910 = vld [vmem:[#allocation7 + $0x8] sm:$0xff]
        %v1911 = vld [vmem:[#allocation7 + $0x10] sm:$0xff]
        %v1912 = vld [vmem:[#allocation7 + $0x18] sm:$0xff]
        %v1913 = vld [vmem:[#allocation7 + $0x20] sm:$0xff]
        %v1914 = vld [vmem:[#allocation7 + $0x28] sm:$0xff]
        %v1915 = vld [vmem:[#allocation7 + $0x30] sm:$0xff]
        %v1916 = vld [vmem:[#allocation7 + $0x38] sm:$0xff]
        %v1917 = vld [vmem:[#allocation7 + $0x40] sm:$0xff]
        %v1918 = vld [vmem:[#allocation7 + $0x48] sm:$0xff]
        %v1919 = vld [vmem:[#allocation7 + $0x50] sm:$0xff]
        %v1920 = vld [vmem:[#allocation7 + $0x58] sm:$0xff]
        %v1921 = vld [vmem:[#allocation7 + $0x60] sm:$0xff]
        %v1922 = vld [vmem:[#allocation7 + $0x68] sm:$0xff]
        %v1923 = vld [vmem:[#allocation7 + $0x70] sm:$0xff]
        %v1924 = vld [vmem:[#allocation7 + $0x78] sm:$0xff]
        %v1925 = vld [vmem:[#allocation7 + $0x80] sm:$0xff]
        %v1926 = vld [vmem:[#allocation7 + $0x88] sm:$0xff]
        %v1927 = vld [vmem:[#allocation7 + $0x90] sm:$0xff]
        %v1928 = vld [vmem:[#allocation7 + $0x98] sm:$0xff]
        %v1929 = vld [vmem:[#allocation7 + $0xa0] sm:$0xff]
        %v1930 = vld [vmem:[#allocation7 + $0xa8] sm:$0xff]
        %v1931 = vld [vmem:[#allocation7 + $0xb0] sm:$0xff]
        %v1932 = vld [vmem:[#allocation7 + $0xb8] sm:$0xff]
        %v1933 = vld [vmem:[#allocation7 + $0xc0] sm:$0xff]
        %v1934 = vld [vmem:[#allocation7 + $0xc8] sm:$0xff]
        %v1935 = vld [vmem:[#allocation7 + $0xd0] sm:$0xff]
        %v1936 = vld [vmem:[#allocation7 + $0xd8] sm:$0xff]
        %v1937 = vld [vmem:[#allocation7 + $0xe0] sm:$0xff]
        %v1938 = vld [vmem:[#allocation7 + $0xe8] sm:$0xff]
        %v1939 = vld [vmem:[#allocation7 + $0xf0] sm:$0xff]
        %v1940 = vld [vmem:[#allocation7 + $0xf8] sm:$0xff]
        %v1941 = vld [vmem:[%s10] sm:$0x3]
        %v1943 = vlaneseq
        %v1944 = vshrl.u32 %v1943, 7
        %v1945 = vsub.s32 0, %v1944
        %v1946 = vrot.slane %v1941, %v1945
        %v1947 = vlaneseq
        %v1948 = vshrl.u32 %v1947, 7
        %v1949 = vsub.s32 1, %v1948
        %v1950 = vrot.slane %v1941, %v1949
        %v1985 = vunpack.c.l.b16 %v1909
        %v1986 = vunpack.c.h.b16 %v1909
        %v1987 = vunpack.c.l.b16 %v1910
        %v1988 = vunpack.c.h.b16 %v1910
        %v1989 = vunpack.c.l.b16 %v1911
        %v1990 = vunpack.c.h.b16 %v1911
        %v1991 = vunpack.c.l.b16 %v1912
        %v1992 = vunpack.c.h.b16 %v1912
        %v1993 = vunpack.c.l.b16 %v1913
        %v1994 = vunpack.c.h.b16 %v1913
        %v1995 = vunpack.c.l.b16 %v1914
        %v1996 = vunpack.c.h.b16 %v1914
        %v1997 = vunpack.c.l.b16 %v1915
        %v1998 = vunpack.c.h.b16 %v1915
        %v1999 = vunpack.c.l.b16 %v1916
        %v2000 = vunpack.c.h.b16 %v1916
        %v2001 = vunpack.c.l.b16 %v1917
        %v2002 = vunpack.c.h.b16 %v1917
        %v2003 = vunpack.c.l.b16 %v1918
        %v2004 = vunpack.c.h.b16 %v1918
        %v2005 = vunpack.c.l.b16 %v1919
        %v2006 = vunpack.c.h.b16 %v1919
        %v2007 = vunpack.c.l.b16 %v1920
        %v2008 = vunpack.c.h.b16 %v1920
        %v2009 = vunpack.c.l.b16 %v1921
        %v2010 = vunpack.c.h.b16 %v1921
        %v2011 = vunpack.c.l.b16 %v1922
        %v2012 = vunpack.c.h.b16 %v1922
        %v2013 = vunpack.c.l.b16 %v1923
        %v2014 = vunpack.c.h.b16 %v1923
        %v2015 = vunpack.c.l.b16 %v1924
        %v2016 = vunpack.c.h.b16 %v1924
        %v2017 = vunpack.c.l.b16 %v1925
        %v2018 = vunpack.c.h.b16 %v1925
        %v2019 = vunpack.c.l.b16 %v1926
        %v2020 = vunpack.c.h.b16 %v1926
        %v2021 = vunpack.c.l.b16 %v1927
        %v2022 = vunpack.c.h.b16 %v1927
        %v2023 = vunpack.c.l.b16 %v1928
        %v2024 = vunpack.c.h.b16 %v1928
        %v2025 = vunpack.c.l.b16 %v1929
        %v2026 = vunpack.c.h.b16 %v1929
        %v2027 = vunpack.c.l.b16 %v1930
        %v2028 = vunpack.c.h.b16 %v1930
        %v2029 = vunpack.c.l.b16 %v1931
        %v2030 = vunpack.c.h.b16 %v1931
        %v2031 = vunpack.c.l.b16 %v1932
        %v2032 = vunpack.c.h.b16 %v1932
        %v2033 = vunpack.c.l.b16 %v1933
        %v2034 = vunpack.c.h.b16 %v1933
        %v2035 = vunpack.c.l.b16 %v1934
        %v2036 = vunpack.c.h.b16 %v1934
        %v2037 = vunpack.c.l.b16 %v1935
        %v2038 = vunpack.c.h.b16 %v1935
        %v2039 = vunpack.c.l.b16 %v1936
        %v2040 = vunpack.c.h.b16 %v1936
        %v2041 = vunpack.c.l.b16 %v1937
        %v2042 = vunpack.c.h.b16 %v1937
        %v2043 = vunpack.c.l.b16 %v1938
        %v2044 = vunpack.c.h.b16 %v1938
        %v2045 = vunpack.c.l.b16 %v1939
        %v2046 = vunpack.c.h.b16 %v1939
        %v2047 = vunpack.c.l.b16 %v1940
        %v2048 = vunpack.c.h.b16 %v1940
        %v2049 = vpack.c.b16 %v1987, %v1985
        %v2050 = vpack.c.b16 %v1988, %v1986
        %v2051 = vpack.c.b16 %v1991, %v1989
        %v2052 = vpack.c.b16 %v1992, %v1990
        %v2053 = vpack.c.b16 %v1995, %v1993
        %v2054 = vpack.c.b16 %v1996, %v1994
        %v2055 = vpack.c.b16 %v1999, %v1997
        %v2056 = vpack.c.b16 %v2000, %v1998
        %v2057 = vpack.c.b16 %v2003, %v2001
        %v2058 = vpack.c.b16 %v2004, %v2002
        %v2059 = vpack.c.b16 %v2007, %v2005
        %v2060 = vpack.c.b16 %v2008, %v2006
        %v2061 = vpack.c.b16 %v2011, %v2009
        %v2062 = vpack.c.b16 %v2012, %v2010
        %v2063 = vpack.c.b16 %v2015, %v2013
        %v2064 = vpack.c.b16 %v2016, %v2014
        %v2065 = vpack.c.b16 %v2019, %v2017
        %v2066 = vpack.c.b16 %v2020, %v2018
        %v2067 = vpack.c.b16 %v2023, %v2021
        %v2068 = vpack.c.b16 %v2024, %v2022
        %v2069 = vpack.c.b16 %v2027, %v2025
        %v2070 = vpack.c.b16 %v2028, %v2026
        %v2071 = vpack.c.b16 %v2031, %v2029
        %v2072 = vpack.c.b16 %v2032, %v2030
        %v2073 = vpack.c.b16 %v2035, %v2033
        %v2074 = vpack.c.b16 %v2036, %v2034
        %v2075 = vpack.c.b16 %v2039, %v2037
        %v2076 = vpack.c.b16 %v2040, %v2038
        %v2077 = vpack.c.b16 %v2043, %v2041
        %v2078 = vpack.c.b16 %v2044, %v2042
        %v2079 = vpack.c.b16 %v2047, %v2045
        %v2080 = vpack.c.b16 %v2048, %v2046
        %2113 = vmatprep.subr.bf16.mxu0 %v2064
        %2114 = vmatpush1.bf16.msra.mxu0 %v2063
        %2115 = vmatprep.subr.bf16.mxu0 %v2062
        %2116 = vmatpush1.bf16.msra.mxu0 %v2061
        %2117 = vmatprep.subr.bf16.mxu0 %v2060
        %2118 = vmatpush1.bf16.msra.mxu0 %v2059
        %2119 = vmatprep.subr.bf16.mxu0 %v2058
        %2120 = vmatpush1.bf16.msra.mxu0 %v2057
        %2121 = vmatprep.subr.bf16.mxu0 %v2056
        %2122 = vmatpush1.bf16.msra.mxu0 %v2055
        %2123 = vmatprep.subr.bf16.mxu0 %v2054
        %2124 = vmatpush1.bf16.msra.mxu0 %v2053
        %2125 = vmatprep.subr.bf16.mxu0 %v2052
        %2126 = vmatpush1.bf16.msra.mxu0 %v2051
        %2127 = vmatprep.subr.bf16.mxu0 %v2050
        %2128 = vmatpush1.bf16.msra.mxu0 %v2049
        %2129 = vmatprep.subr.bf16.mxu0 %v2080
        %2130 = vmatpush2.bf16.msra.mxu0 %v2079
        %2131 = vmatprep.subr.bf16.mxu0 %v2078
        %2132 = vmatpush2.bf16.msra.mxu0 %v2077
        %2133 = vmatprep.subr.bf16.mxu0 %v2076
        %2134 = vmatpush2.bf16.msra.mxu0 %v2075
        %2135 = vmatprep.subr.bf16.mxu0 %v2074
        %2136 = vmatpush2.bf16.msra.mxu0 %v2073
        %2137 = vmatprep.subr.bf16.mxu0 %v2072
        %2138 = vmatpush2.bf16.msra.mxu0 %v2071
        %2139 = vmatprep.subr.bf16.mxu0 %v2070
        %2140 = vmatpush2.bf16.msra.mxu0 %v2069
        %2141 = vmatprep.subr.bf16.mxu0 %v2068
        %2142 = vmatpush2.bf16.msra.mxu0 %v2067
        %2143 = vmatprep.subr.bf16.mxu0 %v2066
        %2144 = vmatpush2.bf16.msra.mxu0 %v2065
        %2145 = vmatprep.mubr.bf16.mxu0 %v1908
        %2146 = vmatmul.mubr.bf16.gmra.mxu0 %v1907
        %v2147 = vpop.f32.mrf.mxu0
        %v2148 = vadd.f32 %v1946, %v2147
        %v2149 = vpop.f32.mrf.mxu0
        %v2150 = vadd.f32 %v1950, %v2149
        %v2151 = vpop.f32.mrf.mxu0
        %v2152 = vpop.f32.mrf.mxu0
        %2153 = vdwg.mxu0
        %v2154 = vpack.c.bf16 %v1885, %v1885
        %v2155 = vpack.c.bf16 %v1887, %v1887
        %v2156 = vxor.u32 %v2154, 2147516416
        %v2157 = vxor.u32 %v2155, 2147516416
        %v2159 = vmul.bf16 %v2156, 1069105081
        %v2160 = vpow.bf16.pop %v2159
        %v2162 = vmul.bf16 %v2157, 1069105081
        %v2163 = vpow.bf16.pop %v2162
        %v2164 = vadd.bf16 %v2160, 1065369472
        %v2165 = vadd.bf16 %v2163, 1065369472
        %v2166 = vrcp.bf16.pop %v2164
        %v2167 = vmul.bf16 1065369472, %v2166
        %v2168 = vrcp.bf16.pop %v2165
        %v2169 = vmul.bf16 1065369472, %v2168
        %v2170 = vmul.bf16 %v2167, %v2154
        %v2171 = vmul.bf16 %v2169, %v2155
        %s2172 = scalar_lea.vmem [#allocation6], 256
        %v2173 = vld [vmem:[%s2172] sm:$0xff]
        %v2174 = vld [vmem:[%s2172 + $0x8] sm:$0xff]
        %v2175 = vld [vmem:[%s2172 + $0x10] sm:$0xff]
        %v2176 = vld [vmem:[%s2172 + $0x18] sm:$0xff]
        %v2177 = vld [vmem:[%s2172 + $0x20] sm:$0xff]
        %v2178 = vld [vmem:[%s2172 + $0x28] sm:$0xff]
        %v2179 = vld [vmem:[%s2172 + $0x30] sm:$0xff]
        %v2180 = vld [vmem:[%s2172 + $0x38] sm:$0xff]
        %v2181 = vld [vmem:[%s2172 + $0x40] sm:$0xff]
        %v2182 = vld [vmem:[%s2172 + $0x48] sm:$0xff]
        %v2183 = vld [vmem:[%s2172 + $0x50] sm:$0xff]
        %v2184 = vld [vmem:[%s2172 + $0x58] sm:$0xff]
        %v2185 = vld [vmem:[%s2172 + $0x60] sm:$0xff]
        %v2186 = vld [vmem:[%s2172 + $0x68] sm:$0xff]
        %v2187 = vld [vmem:[%s2172 + $0x70] sm:$0xff]
        %v2188 = vld [vmem:[%s2172 + $0x78] sm:$0xff]
        %v2189 = vld [vmem:[%s2172 + $0x80] sm:$0xff]
        %v2190 = vld [vmem:[%s2172 + $0x88] sm:$0xff]
        %v2191 = vld [vmem:[%s2172 + $0x90] sm:$0xff]
        %v2192 = vld [vmem:[%s2172 + $0x98] sm:$0xff]
        %v2193 = vld [vmem:[%s2172 + $0xa0] sm:$0xff]
        %v2194 = vld [vmem:[%s2172 + $0xa8] sm:$0xff]
        %v2195 = vld [vmem:[%s2172 + $0xb0] sm:$0xff]
        %v2196 = vld [vmem:[%s2172 + $0xb8] sm:$0xff]
        %v2197 = vld [vmem:[%s2172 + $0xc0] sm:$0xff]
        %v2198 = vld [vmem:[%s2172 + $0xc8] sm:$0xff]
        %v2199 = vld [vmem:[%s2172 + $0xd0] sm:$0xff]
        %v2200 = vld [vmem:[%s2172 + $0xd8] sm:$0xff]
        %v2201 = vld [vmem:[%s2172 + $0xe0] sm:$0xff]
        %v2202 = vld [vmem:[%s2172 + $0xe8] sm:$0xff]
        %v2203 = vld [vmem:[%s2172 + $0xf0] sm:$0xff]
        %v2204 = vld [vmem:[%s2172 + $0xf8] sm:$0xff]
        %s2205 = scalar_lea.vmem %s8, 2
        %v2206 = vld [vmem:[%s2205] sm:$0x3]
        %v2208 = vlaneseq
        %v2209 = vshrl.u32 %v2208, 7
        %v2210 = vsub.s32 0, %v2209
        %v2211 = vrot.slane %v2206, %v2210
        %v2212 = vlaneseq
        %v2213 = vshrl.u32 %v2212, 7
        %v2214 = vsub.s32 1, %v2213
        %v2215 = vrot.slane %v2206, %v2214
        %v2250 = vunpack.c.l.b16 %v2173
        %v2251 = vunpack.c.h.b16 %v2173
        %v2252 = vunpack.c.l.b16 %v2174
        %v2253 = vunpack.c.h.b16 %v2174
        %v2254 = vunpack.c.l.b16 %v2175
        %v2255 = vunpack.c.h.b16 %v2175
        %v2256 = vunpack.c.l.b16 %v2176
        %v2257 = vunpack.c.h.b16 %v2176
        %v2258 = vunpack.c.l.b16 %v2177
        %v2259 = vunpack.c.h.b16 %v2177
        %v2260 = vunpack.c.l.b16 %v2178
        %v2261 = vunpack.c.h.b16 %v2178
        %v2262 = vunpack.c.l.b16 %v2179
        %v2263 = vunpack.c.h.b16 %v2179
        %v2264 = vunpack.c.l.b16 %v2180
        %v2265 = vunpack.c.h.b16 %v2180
        %v2266 = vunpack.c.l.b16 %v2181
        %v2267 = vunpack.c.h.b16 %v2181
        %v2268 = vunpack.c.l.b16 %v2182
        %v2269 = vunpack.c.h.b16 %v2182
        %v2270 = vunpack.c.l.b16 %v2183
        %v2271 = vunpack.c.h.b16 %v2183
        %v2272 = vunpack.c.l.b16 %v2184
        %v2273 = vunpack.c.h.b16 %v2184
        %v2274 = vunpack.c.l.b16 %v2185
        %v2275 = vunpack.c.h.b16 %v2185
        %v2276 = vunpack.c.l.b16 %v2186
        %v2277 = vunpack.c.h.b16 %v2186
        %v2278 = vunpack.c.l.b16 %v2187
        %v2279 = vunpack.c.h.b16 %v2187
        %v2280 = vunpack.c.l.b16 %v2188
        %v2281 = vunpack.c.h.b16 %v2188
        %v2282 = vunpack.c.l.b16 %v2189
        %v2283 = vunpack.c.h.b16 %v2189
        %v2284 = vunpack.c.l.b16 %v2190
        %v2285 = vunpack.c.h.b16 %v2190
        %v2286 = vunpack.c.l.b16 %v2191
        %v2287 = vunpack.c.h.b16 %v2191
        %v2288 = vunpack.c.l.b16 %v2192
        %v2289 = vunpack.c.h.b16 %v2192
        %v2290 = vunpack.c.l.b16 %v2193
        %v2291 = vunpack.c.h.b16 %v2193
        %v2292 = vunpack.c.l.b16 %v2194
        %v2293 = vunpack.c.h.b16 %v2194
        %v2294 = vunpack.c.l.b16 %v2195
        %v2295 = vunpack.c.h.b16 %v2195
        %v2296 = vunpack.c.l.b16 %v2196
        %v2297 = vunpack.c.h.b16 %v2196
        %v2298 = vunpack.c.l.b16 %v2197
        %v2299 = vunpack.c.h.b16 %v2197
        %v2300 = vunpack.c.l.b16 %v2198
        %v2301 = vunpack.c.h.b16 %v2198
        %v2302 = vunpack.c.l.b16 %v2199
        %v2303 = vunpack.c.h.b16 %v2199
        %v2304 = vunpack.c.l.b16 %v2200
        %v2305 = vunpack.c.h.b16 %v2200
        %v2306 = vunpack.c.l.b16 %v2201
        %v2307 = vunpack.c.h.b16 %v2201
        %v2308 = vunpack.c.l.b16 %v2202
        %v2309 = vunpack.c.h.b16 %v2202
        %v2310 = vunpack.c.l.b16 %v2203
        %v2311 = vunpack.c.h.b16 %v2203
        %v2312 = vunpack.c.l.b16 %v2204
        %v2313 = vunpack.c.h.b16 %v2204
        %v2314 = vpack.c.b16 %v2252, %v2250
        %v2315 = vpack.c.b16 %v2253, %v2251
        %v2316 = vpack.c.b16 %v2256, %v2254
        %v2317 = vpack.c.b16 %v2257, %v2255
        %v2318 = vpack.c.b16 %v2260, %v2258
        %v2319 = vpack.c.b16 %v2261, %v2259
        %v2320 = vpack.c.b16 %v2264, %v2262
        %v2321 = vpack.c.b16 %v2265, %v2263
        %v2322 = vpack.c.b16 %v2268, %v2266
        %v2323 = vpack.c.b16 %v2269, %v2267
        %v2324 = vpack.c.b16 %v2272, %v2270
        %v2325 = vpack.c.b16 %v2273, %v2271
        %v2326 = vpack.c.b16 %v2276, %v2274
        %v2327 = vpack.c.b16 %v2277, %v2275
        %v2328 = vpack.c.b16 %v2280, %v2278
        %v2329 = vpack.c.b16 %v2281, %v2279
        %v2330 = vpack.c.b16 %v2284, %v2282
        %v2331 = vpack.c.b16 %v2285, %v2283
        %v2332 = vpack.c.b16 %v2288, %v2286
        %v2333 = vpack.c.b16 %v2289, %v2287
        %v2334 = vpack.c.b16 %v2292, %v2290
        %v2335 = vpack.c.b16 %v2293, %v2291
        %v2336 = vpack.c.b16 %v2296, %v2294
        %v2337 = vpack.c.b16 %v2297, %v2295
        %v2338 = vpack.c.b16 %v2300, %v2298
        %v2339 = vpack.c.b16 %v2301, %v2299
        %v2340 = vpack.c.b16 %v2304, %v2302
        %v2341 = vpack.c.b16 %v2305, %v2303
        %v2342 = vpack.c.b16 %v2308, %v2306
        %v2343 = vpack.c.b16 %v2309, %v2307
        %v2344 = vpack.c.b16 %v2312, %v2310
        %v2345 = vpack.c.b16 %v2313, %v2311
        %2378 = vmatprep.subr.bf16.mxu0 %v2329
        %2379 = vmatpush1.bf16.msra.mxu0 %v2328
        %2380 = vmatprep.subr.bf16.mxu0 %v2327
        %2381 = vmatpush1.bf16.msra.mxu0 %v2326
        %2382 = vmatprep.subr.bf16.mxu0 %v2325
        %2383 = vmatpush1.bf16.msra.mxu0 %v2324
        %2384 = vmatprep.subr.bf16.mxu0 %v2323
        %2385 = vmatpush1.bf16.msra.mxu0 %v2322
        %2386 = vmatprep.subr.bf16.mxu0 %v2321
        %2387 = vmatpush1.bf16.msra.mxu0 %v2320
        %2388 = vmatprep.subr.bf16.mxu0 %v2319
        %2389 = vmatpush1.bf16.msra.mxu0 %v2318
        %2390 = vmatprep.subr.bf16.mxu0 %v2317
        %2391 = vmatpush1.bf16.msra.mxu0 %v2316
        %2392 = vmatprep.subr.bf16.mxu0 %v2315
        %2393 = vmatpush1.bf16.msra.mxu0 %v2314
        %2394 = vmatprep.subr.bf16.mxu0 %v2345
        %2395 = vmatpush2.bf16.msra.mxu0 %v2344
        %2396 = vmatprep.subr.bf16.mxu0 %v2343
        %2397 = vmatpush2.bf16.msra.mxu0 %v2342
        %2398 = vmatprep.subr.bf16.mxu0 %v2341
        %2399 = vmatpush2.bf16.msra.mxu0 %v2340
        %2400 = vmatprep.subr.bf16.mxu0 %v2339
        %2401 = vmatpush2.bf16.msra.mxu0 %v2338
        %2402 = vmatprep.subr.bf16.mxu0 %v2337
        %2403 = vmatpush2.bf16.msra.mxu0 %v2336
        %2404 = vmatprep.subr.bf16.mxu0 %v2335
        %2405 = vmatpush2.bf16.msra.mxu0 %v2334
        %2406 = vmatprep.subr.bf16.mxu0 %v2333
        %2407 = vmatpush2.bf16.msra.mxu0 %v2332
        %2408 = vmatprep.subr.bf16.mxu0 %v2331
        %2409 = vmatpush2.bf16.msra.mxu0 %v2330
        %2410 = vmatprep.mubr.bf16.mxu0 %v2171
        %2411 = vmatmul.mubr.bf16.gmra.mxu0 %v2170
        %v2412 = vpop.f32.mrf.mxu0
        %v2413 = vadd.f32 %v2211, %v2412
        %v2414 = vpop.f32.mrf.mxu0
        %v2415 = vadd.f32 %v2215, %v2414
        %v2416 = vpop.f32.mrf.mxu0
        %v2417 = vpop.f32.mrf.mxu0
        %2418 = vdwg.mxu0
        %v2419 = vpack.c.bf16 %v2148, %v2148
        %v2420 = vpack.c.bf16 %v2150, %v2150
        %v2421 = vxor.u32 %v2419, 2147516416
        %v2422 = vxor.u32 %v2420, 2147516416
        %v2424 = vmul.bf16 %v2421, 1069105081
        %v2425 = vpow.bf16.pop %v2424
        %v2427 = vmul.bf16 %v2422, 1069105081
        %v2428 = vpow.bf16.pop %v2427
        %v2429 = vadd.bf16 %v2425, 1065369472
        %v2430 = vadd.bf16 %v2428, 1065369472
        %v2431 = vrcp.bf16.pop %v2429
        %v2432 = vmul.bf16 1065369472, %v2431
        %v2433 = vrcp.bf16.pop %v2430
        %v2434 = vmul.bf16 1065369472, %v2433
        %v2435 = vmul.bf16 %v2432, %v2419
        %v2436 = vmul.bf16 %v2434, %v2420
        %s2437 = scalar_lea.vmem [#allocation7], 256
        %v2438 = vld [vmem:[%s2437] sm:$0xff]
        %v2439 = vld [vmem:[%s2437 + $0x8] sm:$0xff]
        %v2440 = vld [vmem:[%s2437 + $0x10] sm:$0xff]
        %v2441 = vld [vmem:[%s2437 + $0x18] sm:$0xff]
        %v2442 = vld [vmem:[%s2437 + $0x20] sm:$0xff]
        %v2443 = vld [vmem:[%s2437 + $0x28] sm:$0xff]
        %v2444 = vld [vmem:[%s2437 + $0x30] sm:$0xff]
        %v2445 = vld [vmem:[%s2437 + $0x38] sm:$0xff]
        %v2446 = vld [vmem:[%s2437 + $0x40] sm:$0xff]
        %v2447 = vld [vmem:[%s2437 + $0x48] sm:$0xff]
        %v2448 = vld [vmem:[%s2437 + $0x50] sm:$0xff]
        %v2449 = vld [vmem:[%s2437 + $0x58] sm:$0xff]
        %v2450 = vld [vmem:[%s2437 + $0x60] sm:$0xff]
        %v2451 = vld [vmem:[%s2437 + $0x68] sm:$0xff]
        %v2452 = vld [vmem:[%s2437 + $0x70] sm:$0xff]
        %v2453 = vld [vmem:[%s2437 + $0x78] sm:$0xff]
        %v2454 = vld [vmem:[%s2437 + $0x80] sm:$0xff]
        %v2455 = vld [vmem:[%s2437 + $0x88] sm:$0xff]
        %v2456 = vld [vmem:[%s2437 + $0x90] sm:$0xff]
        %v2457 = vld [vmem:[%s2437 + $0x98] sm:$0xff]
        %v2458 = vld [vmem:[%s2437 + $0xa0] sm:$0xff]
        %v2459 = vld [vmem:[%s2437 + $0xa8] sm:$0xff]
        %v2460 = vld [vmem:[%s2437 + $0xb0] sm:$0xff]
        %v2461 = vld [vmem:[%s2437 + $0xb8] sm:$0xff]
        %v2462 = vld [vmem:[%s2437 + $0xc0] sm:$0xff]
        %v2463 = vld [vmem:[%s2437 + $0xc8] sm:$0xff]
        %v2464 = vld [vmem:[%s2437 + $0xd0] sm:$0xff]
        %v2465 = vld [vmem:[%s2437 + $0xd8] sm:$0xff]
        %v2466 = vld [vmem:[%s2437 + $0xe0] sm:$0xff]
        %v2467 = vld [vmem:[%s2437 + $0xe8] sm:$0xff]
        %v2468 = vld [vmem:[%s2437 + $0xf0] sm:$0xff]
        %v2469 = vld [vmem:[%s2437 + $0xf8] sm:$0xff]
        %s2470 = scalar_lea.vmem %s10, 2
        %v2471 = vld [vmem:[%s2470] sm:$0x3]
        %v2473 = vlaneseq
        %v2474 = vshrl.u32 %v2473, 7
        %v2475 = vsub.s32 0, %v2474
        %v2476 = vrot.slane %v2471, %v2475
        %v2477 = vlaneseq
        %v2478 = vshrl.u32 %v2477, 7
        %v2479 = vsub.s32 1, %v2478
        %v2480 = vrot.slane %v2471, %v2479
        %v2515 = vunpack.c.l.b16 %v2438
        %v2516 = vunpack.c.h.b16 %v2438
        %v2517 = vunpack.c.l.b16 %v2439
        %v2518 = vunpack.c.h.b16 %v2439
        %v2519 = vunpack.c.l.b16 %v2440
        %v2520 = vunpack.c.h.b16 %v2440
        %v2521 = vunpack.c.l.b16 %v2441
        %v2522 = vunpack.c.h.b16 %v2441
        %v2523 = vunpack.c.l.b16 %v2442
        %v2524 = vunpack.c.h.b16 %v2442
        %v2525 = vunpack.c.l.b16 %v2443
        %v2526 = vunpack.c.h.b16 %v2443
        %v2527 = vunpack.c.l.b16 %v2444
        %v2528 = vunpack.c.h.b16 %v2444
        %v2529 = vunpack.c.l.b16 %v2445
        %v2530 = vunpack.c.h.b16 %v2445
        %v2531 = vunpack.c.l.b16 %v2446
        %v2532 = vunpack.c.h.b16 %v2446
        %v2533 = vunpack.c.l.b16 %v2447
        %v2534 = vunpack.c.h.b16 %v2447
        %v2535 = vunpack.c.l.b16 %v2448
        %v2536 = vunpack.c.h.b16 %v2448
        %v2537 = vunpack.c.l.b16 %v2449
        %v2538 = vunpack.c.h.b16 %v2449
        %v2539 = vunpack.c.l.b16 %v2450
        %v2540 = vunpack.c.h.b16 %v2450
        %v2541 = vunpack.c.l.b16 %v2451
        %v2542 = vunpack.c.h.b16 %v2451
        %v2543 = vunpack.c.l.b16 %v2452
        %v2544 = vunpack.c.h.b16 %v2452
        %v2545 = vunpack.c.l.b16 %v2453
        %v2546 = vunpack.c.h.b16 %v2453
        %v2547 = vunpack.c.l.b16 %v2454
        %v2548 = vunpack.c.h.b16 %v2454
        %v2549 = vunpack.c.l.b16 %v2455
        %v2550 = vunpack.c.h.b16 %v2455
        %v2551 = vunpack.c.l.b16 %v2456
        %v2552 = vunpack.c.h.b16 %v2456
        %v2553 = vunpack.c.l.b16 %v2457
        %v2554 = vunpack.c.h.b16 %v2457
        %v2555 = vunpack.c.l.b16 %v2458
        %v2556 = vunpack.c.h.b16 %v2458
        %v2557 = vunpack.c.l.b16 %v2459
        %v2558 = vunpack.c.h.b16 %v2459
        %v2559 = vunpack.c.l.b16 %v2460
        %v2560 = vunpack.c.h.b16 %v2460
        %v2561 = vunpack.c.l.b16 %v2461
        %v2562 = vunpack.c.h.b16 %v2461
        %v2563 = vunpack.c.l.b16 %v2462
        %v2564 = vunpack.c.h.b16 %v2462
        %v2565 = vunpack.c.l.b16 %v2463
        %v2566 = vunpack.c.h.b16 %v2463
        %v2567 = vunpack.c.l.b16 %v2464
        %v2568 = vunpack.c.h.b16 %v2464
        %v2569 = vunpack.c.l.b16 %v2465
        %v2570 = vunpack.c.h.b16 %v2465
        %v2571 = vunpack.c.l.b16 %v2466
        %v2572 = vunpack.c.h.b16 %v2466
        %v2573 = vunpack.c.l.b16 %v2467
        %v2574 = vunpack.c.h.b16 %v2467
        %v2575 = vunpack.c.l.b16 %v2468
        %v2576 = vunpack.c.h.b16 %v2468
        %v2577 = vunpack.c.l.b16 %v2469
        %v2578 = vunpack.c.h.b16 %v2469
        %v2579 = vpack.c.b16 %v2517, %v2515
        %v2580 = vpack.c.b16 %v2518, %v2516
        %v2581 = vpack.c.b16 %v2521, %v2519
        %v2582 = vpack.c.b16 %v2522, %v2520
        %v2583 = vpack.c.b16 %v2525, %v2523
        %v2584 = vpack.c.b16 %v2526, %v2524
        %v2585 = vpack.c.b16 %v2529, %v2527
        %v2586 = vpack.c.b16 %v2530, %v2528
        %v2587 = vpack.c.b16 %v2533, %v2531
        %v2588 = vpack.c.b16 %v2534, %v2532
        %v2589 = vpack.c.b16 %v2537, %v2535
        %v2590 = vpack.c.b16 %v2538, %v2536
        %v2591 = vpack.c.b16 %v2541, %v2539
        %v2592 = vpack.c.b16 %v2542, %v2540
        %v2593 = vpack.c.b16 %v2545, %v2543
        %v2594 = vpack.c.b16 %v2546, %v2544
        %v2595 = vpack.c.b16 %v2549, %v2547
        %v2596 = vpack.c.b16 %v2550, %v2548
        %v2597 = vpack.c.b16 %v2553, %v2551
        %v2598 = vpack.c.b16 %v2554, %v2552
        %v2599 = vpack.c.b16 %v2557, %v2555
        %v2600 = vpack.c.b16 %v2558, %v2556
        %v2601 = vpack.c.b16 %v2561, %v2559
        %v2602 = vpack.c.b16 %v2562, %v2560
        %v2603 = vpack.c.b16 %v2565, %v2563
        %v2604 = vpack.c.b16 %v2566, %v2564
        %v2605 = vpack.c.b16 %v2569, %v2567
        %v2606 = vpack.c.b16 %v2570, %v2568
        %v2607 = vpack.c.b16 %v2573, %v2571
        %v2608 = vpack.c.b16 %v2574, %v2572
        %v2609 = vpack.c.b16 %v2577, %v2575
        %v2610 = vpack.c.b16 %v2578, %v2576
        %2643 = vmatprep.subr.bf16.mxu0 %v2594
        %2644 = vmatpush1.bf16.msra.mxu0 %v2593
        %2645 = vmatprep.subr.bf16.mxu0 %v2592
        %2646 = vmatpush1.bf16.msra.mxu0 %v2591
        %2647 = vmatprep.subr.bf16.mxu0 %v2590
        %2648 = vmatpush1.bf16.msra.mxu0 %v2589
        %2649 = vmatprep.subr.bf16.mxu0 %v2588
        %2650 = vmatpush1.bf16.msra.mxu0 %v2587
        %2651 = vmatprep.subr.bf16.mxu0 %v2586
        %2652 = vmatpush1.bf16.msra.mxu0 %v2585
        %2653 = vmatprep.subr.bf16.mxu0 %v2584
        %2654 = vmatpush1.bf16.msra.mxu0 %v2583
        %2655 = vmatprep.subr.bf16.mxu0 %v2582
        %2656 = vmatpush1.bf16.msra.mxu0 %v2581
        %2657 = vmatprep.subr.bf16.mxu0 %v2580
        %2658 = vmatpush1.bf16.msra.mxu0 %v2579
        %2659 = vmatprep.subr.bf16.mxu0 %v2610
        %2660 = vmatpush2.bf16.msra.mxu0 %v2609
        %2661 = vmatprep.subr.bf16.mxu0 %v2608
        %2662 = vmatpush2.bf16.msra.mxu0 %v2607
        %2663 = vmatprep.subr.bf16.mxu0 %v2606
        %2664 = vmatpush2.bf16.msra.mxu0 %v2605
        %2665 = vmatprep.subr.bf16.mxu0 %v2604
        %2666 = vmatpush2.bf16.msra.mxu0 %v2603
        %2667 = vmatprep.subr.bf16.mxu0 %v2602
        %2668 = vmatpush2.bf16.msra.mxu0 %v2601
        %2669 = vmatprep.subr.bf16.mxu0 %v2600
        %2670 = vmatpush2.bf16.msra.mxu0 %v2599
        %2671 = vmatprep.subr.bf16.mxu0 %v2598
        %2672 = vmatpush2.bf16.msra.mxu0 %v2597
        %2673 = vmatprep.subr.bf16.mxu0 %v2596
        %2674 = vmatpush2.bf16.msra.mxu0 %v2595
        %2675 = vmatprep.mubr.bf16.mxu0 %v2436
        %2676 = vmatmul.mubr.bf16.gmra.mxu0 %v2435
        %v2677 = vpop.f32.mrf.mxu0
        %v2678 = vadd.f32 %v2476, %v2677
        %v2679 = vpop.f32.mrf.mxu0
        %v2680 = vadd.f32 %v2480, %v2679
        %v2681 = vpop.f32.mrf.mxu0
        %v2682 = vpop.f32.mrf.mxu0
        %2683 = vdwg.mxu0
        %v2684 = vpack.c.bf16 %v2413, %v2413
        %v2685 = vpack.c.bf16 %v2415, %v2415
        %v2686 = vxor.u32 %v2684, 2147516416
        %v2687 = vxor.u32 %v2685, 2147516416
        %v2689 = vmul.bf16 %v2686, 1069105081
        %v2690 = vpow.bf16.pop %v2689
        %v2692 = vmul.bf16 %v2687, 1069105081
        %v2693 = vpow.bf16.pop %v2692
        %v2694 = vadd.bf16 %v2690, 1065369472
        %v2695 = vadd.bf16 %v2693, 1065369472
        %v2696 = vrcp.bf16.pop %v2694
        %v2697 = vmul.bf16 1065369472, %v2696
        %v2698 = vrcp.bf16.pop %v2695
        %v2699 = vmul.bf16 1065369472, %v2698
        %v2700 = vmul.bf16 %v2697, %v2684
        %v2701 = vmul.bf16 %v2699, %v2685
        %v2702 = vld [vmem:[%s11] sm:$0xf]
        %v2703 = vld [vmem:[%s11 + $0x4] sm:$0xf]
        %v2704 = vld [vmem:[%s11 + $0x8] sm:$0xf]
        %v2705 = vld [vmem:[%s11 + $0xc] sm:$0xf]
        %v2706 = vld [vmem:[%s11 + $0x10] sm:$0xf]
        %v2707 = vld [vmem:[%s11 + $0x14] sm:$0xf]
        %v2708 = vld [vmem:[%s11 + $0x18] sm:$0xf]
        %v2709 = vld [vmem:[%s11 + $0x1c] sm:$0xf]
        %v2710 = vld [vmem:[%s11 + $0x20] sm:$0xf]
        %v2711 = vld [vmem:[%s11 + $0x24] sm:$0xf]
        %v2712 = vld [vmem:[%s11 + $0x28] sm:$0xf]
        %v2713 = vld [vmem:[%s11 + $0x2c] sm:$0xf]
        %v2714 = vld [vmem:[%s11 + $0x30] sm:$0xf]
        %v2715 = vld [vmem:[%s11 + $0x34] sm:$0xf]
        %v2716 = vld [vmem:[%s11 + $0x38] sm:$0xf]
        %v2717 = vld [vmem:[%s11 + $0x3c] sm:$0xf]
        %v2718 = vld [vmem:[%s11 + $0x40] sm:$0xf]
        %v2719 = vld [vmem:[%s11 + $0x44] sm:$0xf]
        %v2720 = vld [vmem:[%s11 + $0x48] sm:$0xf]
        %v2721 = vld [vmem:[%s11 + $0x4c] sm:$0xf]
        %v2722 = vld [vmem:[%s11 + $0x50] sm:$0xf]
        %v2723 = vld [vmem:[%s11 + $0x54] sm:$0xf]
        %v2724 = vld [vmem:[%s11 + $0x58] sm:$0xf]
        %v2725 = vld [vmem:[%s11 + $0x5c] sm:$0xf]
        %v2726 = vld [vmem:[%s11 + $0x60] sm:$0xf]
        %v2727 = vld [vmem:[%s11 + $0x64] sm:$0xf]
        %v2728 = vld [vmem:[%s11 + $0x68] sm:$0xf]
        %v2729 = vld [vmem:[%s11 + $0x6c] sm:$0xf]
        %v2730 = vld [vmem:[%s11 + $0x70] sm:$0xf]
        %v2731 = vld [vmem:[%s11 + $0x74] sm:$0xf]
        %v2732 = vld [vmem:[%s11 + $0x78] sm:$0xf]
        %v2733 = vld [vmem:[%s11 + $0x7c] sm:$0xf]
        %v2734 = vpack.c.bf16 %v2678, %v2678
        %v2735 = vpack.c.bf16 %v2680, %v2680
        %v2736 = vxor.u32 %v2734, 2147516416
        %v2737 = vxor.u32 %v2735, 2147516416
        %v2739 = vmul.bf16 %v2736, 1069105081
        %v2740 = vpow.bf16.pop %v2739
        %v2742 = vmul.bf16 %v2737, 1069105081
        %v2743 = vpow.bf16.pop %v2742
        %v2744 = vadd.bf16 %v2740, 1065369472
        %v2745 = vadd.bf16 %v2743, 1065369472
        %v2746 = vrcp.bf16.pop %v2744
        %v2747 = vmul.bf16 1065369472, %v2746
        %v2748 = vrcp.bf16.pop %v2745
        %v2749 = vmul.bf16 1065369472, %v2748
        %v2750 = vmul.bf16 %v2747, %v2734
        %v2751 = vmul.bf16 %v2749, %v2735
        %v2752 = vld [vmem:[%s12] sm:$0xf]
        %v2753 = vld [vmem:[%s12 + $0x4] sm:$0xf]
        %v2754 = vld [vmem:[%s12 + $0x8] sm:$0xf]
        %v2755 = vld [vmem:[%s12 + $0xc] sm:$0xf]
        %v2756 = vld [vmem:[%s12 + $0x10] sm:$0xf]
        %v2757 = vld [vmem:[%s12 + $0x14] sm:$0xf]
        %v2758 = vld [vmem:[%s12 + $0x18] sm:$0xf]
        %v2759 = vld [vmem:[%s12 + $0x1c] sm:$0xf]
        %v2760 = vld [vmem:[%s12 + $0x20] sm:$0xf]
        %v2761 = vld [vmem:[%s12 + $0x24] sm:$0xf]
        %v2762 = vld [vmem:[%s12 + $0x28] sm:$0xf]
        %v2763 = vld [vmem:[%s12 + $0x2c] sm:$0xf]
        %v2764 = vld [vmem:[%s12 + $0x30] sm:$0xf]
        %v2765 = vld [vmem:[%s12 + $0x34] sm:$0xf]
        %v2766 = vld [vmem:[%s12 + $0x38] sm:$0xf]
        %v2767 = vld [vmem:[%s12 + $0x3c] sm:$0xf]
        %v2768 = vld [vmem:[%s12 + $0x40] sm:$0xf]
        %v2769 = vld [vmem:[%s12 + $0x44] sm:$0xf]
        %v2770 = vld [vmem:[%s12 + $0x48] sm:$0xf]
        %v2771 = vld [vmem:[%s12 + $0x4c] sm:$0xf]
        %v2772 = vld [vmem:[%s12 + $0x50] sm:$0xf]
        %v2773 = vld [vmem:[%s12 + $0x54] sm:$0xf]
        %v2774 = vld [vmem:[%s12 + $0x58] sm:$0xf]
        %v2775 = vld [vmem:[%s12 + $0x5c] sm:$0xf]
        %v2776 = vld [vmem:[%s12 + $0x60] sm:$0xf]
        %v2777 = vld [vmem:[%s12 + $0x64] sm:$0xf]
        %v2778 = vld [vmem:[%s12 + $0x68] sm:$0xf]
        %v2779 = vld [vmem:[%s12 + $0x6c] sm:$0xf]
        %v2780 = vld [vmem:[%s12 + $0x70] sm:$0xf]
        %v2781 = vld [vmem:[%s12 + $0x74] sm:$0xf]
        %v2782 = vld [vmem:[%s12 + $0x78] sm:$0xf]
        %v2783 = vld [vmem:[%s12 + $0x7c] sm:$0xf]
        %v2816 = vunpack.c.l.b16 %v2752
        %v2817 = vunpack.c.l.b16 %v2753
        %v2818 = vunpack.c.l.b16 %v2754
        %v2819 = vunpack.c.l.b16 %v2755
        %v2820 = vunpack.c.l.b16 %v2756
        %v2821 = vunpack.c.l.b16 %v2757
        %v2822 = vunpack.c.l.b16 %v2758
        %v2823 = vunpack.c.l.b16 %v2759
        %v2824 = vunpack.c.l.b16 %v2760
        %v2825 = vunpack.c.l.b16 %v2761
        %v2826 = vunpack.c.l.b16 %v2762
        %v2827 = vunpack.c.l.b16 %v2763
        %v2828 = vunpack.c.l.b16 %v2764
        %v2829 = vunpack.c.l.b16 %v2765
        %v2830 = vunpack.c.l.b16 %v2766
        %v2831 = vunpack.c.l.b16 %v2767
        %v2832 = vunpack.c.l.b16 %v2768
        %v2833 = vunpack.c.l.b16 %v2769
        %v2834 = vunpack.c.l.b16 %v2770
        %v2835 = vunpack.c.l.b16 %v2771
        %v2836 = vunpack.c.l.b16 %v2772
        %v2837 = vunpack.c.l.b16 %v2773
        %v2838 = vunpack.c.l.b16 %v2774
        %v2839 = vunpack.c.l.b16 %v2775
        %v2840 = vunpack.c.l.b16 %v2776
        %v2841 = vunpack.c.l.b16 %v2777
        %v2842 = vunpack.c.l.b16 %v2778
        %v2843 = vunpack.c.l.b16 %v2779
        %v2844 = vunpack.c.l.b16 %v2780
        %v2845 = vunpack.c.l.b16 %v2781
        %v2846 = vunpack.c.l.b16 %v2782
        %v2847 = vunpack.c.l.b16 %v2783
        %v2848 = vpack.c.b16 %v2817, %v2816
        %v2849 = vpack.c.b16 %v2819, %v2818
        %v2850 = vpack.c.b16 %v2821, %v2820
        %v2851 = vpack.c.b16 %v2823, %v2822
        %v2852 = vpack.c.b16 %v2825, %v2824
        %v2853 = vpack.c.b16 %v2827, %v2826
        %v2854 = vpack.c.b16 %v2829, %v2828
        %v2855 = vpack.c.b16 %v2831, %v2830
        %v2856 = vpack.c.b16 %v2833, %v2832
        %v2857 = vpack.c.b16 %v2835, %v2834
        %v2858 = vpack.c.b16 %v2837, %v2836
        %v2859 = vpack.c.b16 %v2839, %v2838
        %v2860 = vpack.c.b16 %v2841, %v2840
        %v2861 = vpack.c.b16 %v2843, %v2842
        %v2862 = vpack.c.b16 %v2845, %v2844
        %v2863 = vpack.c.b16 %v2847, %v2846
        %2880 = vmatprep.subr.bf16.mxu0 0
        %2881 = vmatpush1.bf16.msra.mxu0 %v2855
        %2882 = vmatprep.subr.bf16.mxu0 0
        %2883 = vmatpush1.bf16.msra.mxu0 %v2854
        %2884 = vmatprep.subr.bf16.mxu0 0
        %2885 = vmatpush1.bf16.msra.mxu0 %v2853
        %2886 = vmatprep.subr.bf16.mxu0 0
        %2887 = vmatpush1.bf16.msra.mxu0 %v2852
        %2888 = vmatprep.subr.bf16.mxu0 0
        %2889 = vmatpush1.bf16.msra.mxu0 %v2851
        %2890 = vmatprep.subr.bf16.mxu0 0
        %2891 = vmatpush1.bf16.msra.mxu0 %v2850
        %2892 = vmatprep.subr.bf16.mxu0 0
        %2893 = vmatpush1.bf16.msra.mxu0 %v2849
        %2894 = vmatprep.subr.bf16.mxu0 0
        %2895 = vmatpush1.bf16.msra.mxu0 %v2848
        %2896 = vmatprep.subr.bf16.mxu0 0
        %2897 = vmatpush2.bf16.msra.mxu0 %v2863
        %2898 = vmatprep.subr.bf16.mxu0 0
        %2899 = vmatpush2.bf16.msra.mxu0 %v2862
        %2900 = vmatprep.subr.bf16.mxu0 0
        %2901 = vmatpush2.bf16.msra.mxu0 %v2861
        %2902 = vmatprep.subr.bf16.mxu0 0
        %2903 = vmatpush2.bf16.msra.mxu0 %v2860
        %2904 = vmatprep.subr.bf16.mxu0 0
        %2905 = vmatpush2.bf16.msra.mxu0 %v2859
        %2906 = vmatprep.subr.bf16.mxu0 0
        %2907 = vmatpush2.bf16.msra.mxu0 %v2858
        %2908 = vmatprep.subr.bf16.mxu0 0
        %2909 = vmatpush2.bf16.msra.mxu0 %v2857
        %2910 = vmatprep.subr.bf16.mxu0 0
        %2911 = vmatpush2.bf16.msra.mxu0 %v2856
        %2912 = vmatprep.mubr.bf16.mxu0 %v2751
        %2913 = vmatmul.mubr.bf16.gmra.mxu0 %v2750
        %v2914 = vpop.f32.mrf.mxu0
        %v2915 = vadd.f32 0.0, %v2914
        %v2916 = vpop.f32.mrf.mxu0
        %v2917 = vpop.f32.mrf.mxu0
        %v2918 = vpop.f32.mrf.mxu0
        %2919 = vdwg.mxu0
        %v2952 = vunpack.c.l.b16 %v2702
        %v2953 = vunpack.c.l.b16 %v2703
        %v2954 = vunpack.c.l.b16 %v2704
        %v2955 = vunpack.c.l.b16 %v2705
        %v2956 = vunpack.c.l.b16 %v2706
        %v2957 = vunpack.c.l.b16 %v2707
        %v2958 = vunpack.c.l.b16 %v2708
        %v2959 = vunpack.c.l.b16 %v2709
        %v2960 = vunpack.c.l.b16 %v2710
        %v2961 = vunpack.c.l.b16 %v2711
        %v2962 = vunpack.c.l.b16 %v2712
        %v2963 = vunpack.c.l.b16 %v2713
        %v2964 = vunpack.c.l.b16 %v2714
        %v2965 = vunpack.c.l.b16 %v2715
        %v2966 = vunpack.c.l.b16 %v2716
        %v2967 = vunpack.c.l.b16 %v2717
        %v2968 = vunpack.c.l.b16 %v2718
        %v2969 = vunpack.c.l.b16 %v2719
        %v2970 = vunpack.c.l.b16 %v2720
        %v2971 = vunpack.c.l.b16 %v2721
        %v2972 = vunpack.c.l.b16 %v2722
        %v2973 = vunpack.c.l.b16 %v2723
        %v2974 = vunpack.c.l.b16 %v2724
        %v2975 = vunpack.c.l.b16 %v2725
        %v2976 = vunpack.c.l.b16 %v2726
        %v2977 = vunpack.c.l.b16 %v2727
        %v2978 = vunpack.c.l.b16 %v2728
        %v2979 = vunpack.c.l.b16 %v2729
        %v2980 = vunpack.c.l.b16 %v2730
        %v2981 = vunpack.c.l.b16 %v2731
        %v2982 = vunpack.c.l.b16 %v2732
        %v2983 = vunpack.c.l.b16 %v2733
        %v2984 = vpack.c.b16 %v2953, %v2952
        %v2985 = vpack.c.b16 %v2955, %v2954
        %v2986 = vpack.c.b16 %v2957, %v2956
        %v2987 = vpack.c.b16 %v2959, %v2958
        %v2988 = vpack.c.b16 %v2961, %v2960
        %v2989 = vpack.c.b16 %v2963, %v2962
        %v2990 = vpack.c.b16 %v2965, %v2964
        %v2991 = vpack.c.b16 %v2967, %v2966
        %v2992 = vpack.c.b16 %v2969, %v2968
        %v2993 = vpack.c.b16 %v2971, %v2970
        %v2994 = vpack.c.b16 %v2973, %v2972
        %v2995 = vpack.c.b16 %v2975, %v2974
        %v2996 = vpack.c.b16 %v2977, %v2976
        %v2997 = vpack.c.b16 %v2979, %v2978
        %v2998 = vpack.c.b16 %v2981, %v2980
        %v2999 = vpack.c.b16 %v2983, %v2982
        %3016 = vmatprep.subr.bf16.mxu0 0
        %3017 = vmatpush1.bf16.msra.mxu0 %v2991
        %3018 = vmatprep.subr.bf16.mxu0 0
        %3019 = vmatpush1.bf16.msra.mxu0 %v2990
        %3020 = vmatprep.subr.bf16.mxu0 0
        %3021 = vmatpush1.bf16.msra.mxu0 %v2989
        %3022 = vmatprep.subr.bf16.mxu0 0
        %3023 = vmatpush1.bf16.msra.mxu0 %v2988
        %3024 = vmatprep.subr.bf16.mxu0 0
        %3025 = vmatpush1.bf16.msra.mxu0 %v2987
        %3026 = vmatprep.subr.bf16.mxu0 0
        %3027 = vmatpush1.bf16.msra.mxu0 %v2986
        %3028 = vmatprep.subr.bf16.mxu0 0
        %3029 = vmatpush1.bf16.msra.mxu0 %v2985
        %3030 = vmatprep.subr.bf16.mxu0 0
        %3031 = vmatpush1.bf16.msra.mxu0 %v2984
        %3032 = vmatprep.subr.bf16.mxu0 0
        %3033 = vmatpush2.bf16.msra.mxu0 %v2999
        %3034 = vmatprep.subr.bf16.mxu0 0
        %3035 = vmatpush2.bf16.msra.mxu0 %v2998
        %3036 = vmatprep.subr.bf16.mxu0 0
        %3037 = vmatpush2.bf16.msra.mxu0 %v2997
        %3038 = vmatprep.subr.bf16.mxu0 0
        %3039 = vmatpush2.bf16.msra.mxu0 %v2996
        %3040 = vmatprep.subr.bf16.mxu0 0
        %3041 = vmatpush2.bf16.msra.mxu0 %v2995
        %3042 = vmatprep.subr.bf16.mxu0 0
        %3043 = vmatpush2.bf16.msra.mxu0 %v2994
        %3044 = vmatprep.subr.bf16.mxu0 0
        %3045 = vmatpush2.bf16.msra.mxu0 %v2993
        %3046 = vmatprep.subr.bf16.mxu0 0
        %3047 = vmatpush2.bf16.msra.mxu0 %v2992
        %3048 = vmatprep.mubr.bf16.mxu0 %v2701
        %3049 = vmatmul.mubr.bf16.gmra.mxu0 %v2700
        %v3050 = vpop.f32.mrf.mxu0
        %v3051 = vadd.f32 %v2915, %v3050
        %v3052 = vpop.f32.mrf.mxu0
        %v3053 = vpop.f32.mrf.mxu0
        %v3054 = vpop.f32.mrf.mxu0
        %3055 = vdwg.mxu0
        %v3056 = vld [vmem:[%s13] sm:$0x1]
        %v3058 = vlaneseq
        %v3059 = vshrl.u32 %v3058, 7
        %v3060 = vsub.s32 0, %v3059
        %v3061 = vrot.slane %v3056, %v3060
        %v3063 = vadd.f32 %v3051, %v3061
        %vm3064 = vcmask 64512
        %3065 = vst.msk [vmem:[%s521] sm:$0xff] %vm3064, %v3063
        %p3066 = scmp.lt.s32.totalorder %s28, 1
        %s3067 = scalar_select %p3066, %s28, 1
        %s3068 = smul.addr %s3067, 8
        %s3069 = scalar_lea.vmem %s14, %s3068
        // Predicated region
        $region93: #{mlp_forward.1} parent=75 // pred_check
          %p3070 = pneg %p345
        $region94: #{mlp_forward.1} parent=75 // pred_check_branch
          %3072 = sbr.rel (%p3070) target = $region96
        $region95: #{mlp_forward.1} parent=75 // pred_region
          _
        $region96: #{mlp_forward.1} parent=75 // pred_fallthru
          _
      $region76: #{mlp_forward.1} parent=5 // pred_fallthru
        _
      %p3073 = scmp.le.s32.totalorder 2, %s23
      // Predicated region
      $region97: #{mlp_forward.1} parent=5 // pred_check
        %p3074 = pneg %p3073
      $region98: #{mlp_forward.1} parent=5 // pred_check_branch
        %3076 = sbr.rel (%p3074) target = $region100
      $region99: #{mlp_forward.1} parent=5 // pred_region
        %s3077 = ssub.s32 %s23, 2
        // Predicated region
        $region101: #{mlp_forward.1} parent=99 // pred_check
          %p3078 = pneg %p351
        $region102: #{mlp_forward.1} parent=99 // pred_check_branch
          %3080 = sbr.rel (%p3078) target = $region104
        $region103: #{mlp_forward.1} parent=99 // pred_region
          %p3081 = scmp.lt.s32.totalorder %s29, 1
          %s3082 = scalar_select %p3081, %s29, 1
          %s3083 = smul.addr %s3082, 8
          %s3084 = scalar_lea.vmem %s14, %s3083
        $region104: #{mlp_forward.1} parent=99 // pred_fallthru
          _
      $region100: #{mlp_forward.1} parent=5 // pred_fallthru
        _
    $region6: #{mlp_forward.1} parent=1 // loop_footer
      %s27 = sadd.s32 1, %s23
    $region7: #{mlp_forward.1} parent=1 // loop_footer_branch
      %22 = sbr.rel target = $region3
    $region8: #{mlp_forward.1} parent=1 // loop_exit
      _
    %3085 = vsyncpa [#allocation3], 1
    %s3086 = scalar_lea.sflag [#allocation3], 1
    %3087 = vsyncpa %s3086, 1
    %3088 = vsyncpa [#allocation5], 1
    %3089 = vsyncpa [#allocation8], 1

</llo_original>
